<compile_context>
chip_gen: v6e
topology: v6e:2x2x1
jax: 0.10.0
libtpu: 0.0.40
codegen_flags: <defaults>
</compile_context>

<pallas_src>
import jax
import jax.numpy as jnp
from jax.experimental import pallas as pl
from jax.experimental.pallas import tpu as pltpu


def _round_up(x, m):
    return ((x + m - 1) // m) * m


def _choose_batch_tile(B, batch_tile):
    """16-aligned batch tile: large enough to amortize per-grid-step overhead, capped so
    B > 64 produces >= 2 'parallel' steps (v7x megacore), minimal padded rows."""
    if B <= 64:
        return _round_up(B, 16)                       # single block, minimal padding
    cap = max(16, _round_up(batch_tile, 16))
    cap = min(cap, _round_up(pl.cdiv(B, 2), 16))      # guarantee >= 2 grid steps
    steps = pl.cdiv(B, cap)                           # fewest steps achievable under cap
    return _round_up(pl.cdiv(B, steps), 16)           # smallest tile reaching that count


def _sac_critic_kernel(
    feat_ref,  # [TB, FD]   bf16  flattened features (streamed over batch)
    act_ref,   # [TB, AD]   bf16  actions            (streamed over batch)
    w1_ref,    # [Kp, 2H]   bf16  packed first-layer weights of both Q heads (zero pad rows)
    b1_ref,    # [1, 2H]    f32
    w2_ref,    # [2, H, H]  bf16  second-layer weights, one slab per head
    b2_ref,    # [2, 1, H]  f32
    w3_ref,    # [2, 1, H]  bf16  output-layer weights as rows
    b3_ref,    # [2, 1, 1]  f32
    q_ref,     # [TB, 2]    f32   merged (q1, q2) output
):
    H = w2_ref.shape[1]
    Kp = w1_ref.shape[0]
    TB, FD = feat_ref.shape
    AD = act_ref.shape[1]

    # Assemble the padded, lane-dense layer-1 operand in registers: [TB, Kp] bf16.
    # (No HBM round trip for the concat, no zero-column DMA; padded columns multiply
    #  the zero rows of w1.)
    parts = [feat_ref[...], act_ref[...]]
    pad = Kp - FD - AD
    if pad > 0:
        parts.append(jnp.zeros((TB, pad), jnp.bfloat16))
    x = jnp.concatenate(parts, axis=1)

    # Layer 1 for BOTH heads in one MXU pass: [TB, Kp] @ [Kp, 2H] -> [TB, 2H] (f32 acc).
    h1 = jnp.dot(x, w1_ref[...], preferred_element_type=jnp.float32) + b1_ref[...]
    h1 = jnp.maximum(h1, 0.0)

    def head(idx):
        h1h = h1[:, idx * H:(idx + 1) * H].astype(jnp.bfloat16)             # [TB, H]
        h2 = jnp.dot(h1h, w2_ref[idx], preferred_element_type=jnp.float32) + b2_ref[idx]
        h2 = jnp.maximum(h2, 0.0)                                           # [TB, H] f32
        # Output Linear(H, 1) as VPU mul + lane reduce (avoids an N=1 MXU matmul).
        w3row = w3_ref[idx].astype(jnp.float32)                             # [1, H]
        return jnp.sum(h2 * w3row, axis=-1, keepdims=True) + b3_ref[idx]    # [TB, 1]

    # Merge both heads into one output block -> single output DMA pipeline per step.
    q_ref[...] = jnp.concatenate([head(0), head(1)], axis=1)


def sac_critic_forward(obs, action, params, *, batch_tile=1024):
    """obs: [B, ...obs dims...], action: [B, AD] -> (q1 [B,1], q2 [B,1])."""
    assert obs.shape[0] == action.shape[0]
    B = obs.shape[0]
    feat = obs.reshape(B, -1)                  # FlattenExtractor (no_grad in torch)
    FD = feat.shape[1]
    AD = action.shape[1]

    w1s, b1s, w2s, b2s, w3s, b3s = params
    Kp, H2 = w1s.shape
    H = H2 // 2
    assert FD + AD <= Kp

    TB = _choose_batch_tile(B, batch_tile)
    Bp = _round_up(B, TB)
    grid = (Bp // TB,)

    # Batch-pad only (no column padding / no concat in HBM).  bf16 storage halves the
    # streamed bytes; the MXU accumulates in f32.
    feat_p = jnp.pad(feat.astype(jnp.bfloat16), ((0, Bp - B), (0, 0)))
    act_p = jnp.pad(action.astype(jnp.bfloat16), ((0, Bp - B), (0, 0)))

    flops = 2 * Bp * (Kp * 2 * H + 2 * H * H + 2 * H)
    bytes_accessed = (
        Bp * (FD + AD) * 2                          # feat + action (bf16)
        + (Kp * 2 * H + 2 * H * H + 2 * H) * 2      # weights (bf16)
        + (2 * H + 2 * H + 2) * 4                   # biases (f32)
        + Bp * 2 * 4                                # merged output (f32)
    )

    # VMEM budget from the actual working set (double-buffered streamed tiles,
    # resident weights, live activations) with ~2x headroom.  A few MiB even at
    # TB=1024 / H=256, so it fits v7x's 64 MiB physical VMEM with room to spare.
    w_bytes = (Kp * 2 * H + 2 * H * H + 2 * H) * 2 + (4 * H + 2) * 4
    io_bytes = 2 * (TB * FD * 2 + TB * AD * 2 + TB * 2 * 4)
    act_bytes = TB * Kp * 2 + TB * 2 * H * 4 + TB * H * 4
    vmem_limit = int(max(8 << 20, min(64 << 20, 2 * (w_bytes + io_bytes + act_bytes) + (1 << 20))))

    def run(weight_pipeline_mode):
        def resident(shape):
            n = len(shape)
            idx_map = lambda i: (0,) * n            # constant -> block stays VMEM-resident
            if weight_pipeline_mode is None:
                return pl.BlockSpec(shape, idx_map)
            return pl.BlockSpec(shape, idx_map, pipeline_mode=weight_pipeline_mode)

        in_specs = [
            pl.BlockSpec((TB, FD), lambda i: (i, 0)),    # feat   (streamed over batch)
            pl.BlockSpec((TB, AD), lambda i: (i, 0)),    # action (streamed over batch)
            resident((Kp, 2 * H)),                       # w1     (resident)
            resident((1, 2 * H)),                        # b1
            resident((2, H, H)),                         # w2
            resident((2, 1, H)),                         # b2
            resident((2, 1, H)),                         # w3
            resident((2, 1, 1)),                         # b3
        ]
        kernel = pl.pallas_call(
            _sac_critic_kernel,
            out_shape=jax.ShapeDtypeStruct((Bp, 2), jnp.float32),
            grid=grid,
            in_specs=in_specs,
            out_specs=pl.BlockSpec((TB, 2), lambda i: (i, 0)),
            compiler_params=pltpu.CompilerParams(
                dimension_semantics=("parallel",),
                vmem_limit_bytes=vmem_limit,
            ),
            cost_estimate=pl.CostEstimate(
                flops=flops, transcendentals=0, bytes_accessed=bytes_accessed),
        )
        return kernel(feat_p, act_p, w1s, b1s, w2s, b2s, w3s, b3s)

    try:
        # Constant index_maps -> weights never change between steps; single-buffering
        # them halves their VMEM footprint and drops useless buffer rotation.
        q = run(pl.Buffered(1))
    except Exception:
        # Fallback for Pallas builds without Buffered(1) support on pallas_call specs.
        q = run(None)

    return q[:B, 0:1], q[:B, 1:2]


def init_params(key, feature_dim, action_dim, hidden_dim):
    """PyTorch-style U(+-1/sqrt(fan_in)) init, packed into the kernel layout.

    NOTE: layer-1 correctness relies on the Kp padding rows of w1 staying exactly zero
    (keep that invariant when loading weights from a checkpoint)."""
    in1 = feature_dim + action_dim
    Kp = _round_up(in1, 128)
    H = hidden_dim
    ks = jax.random.split(key, 12)

    def unif(k, shape, fan_in):
        bound = 1.0 / jnp.sqrt(jnp.float32(fan_in))
        return jax.random.uniform(k, shape, jnp.float32, -bound, bound)

    w1s = jnp.zeros((Kp, 2 * H), jnp.float32)
    b1s = jnp.zeros((1, 2 * H), jnp.float32)
    w2s = jnp.zeros((2, H, H), jnp.float32)
    b2s = jnp.zeros((2, 1, H), jnp.float32)
    w3s = jnp.zeros((2, 1, H), jnp.float32)
    b3s = jnp.zeros((2, 1, 1), jnp.float32)

    for q in range(2):  # two Q heads
        o = 6 * q
        w1s = w1s.at[:in1, q * H:(q + 1) * H].set(unif(ks[o + 0], (in1, H), in1))
        b1s = b1s.at[0, q * H:(q + 1) * H].set(unif(ks[o + 1], (H,), in1))
        w2s = w2s.at[q].set(unif(ks[o + 2], (H, H), H))
        b2s = b2s.at[q, 0].set(unif(ks[o + 3], (H,), H))
        w3s = w3s.at[q, 0].set(unif(ks[o + 4], (H,), H))
        b3s = b3s.at[q, 0, 0].set(unif(ks[o + 5], (), H))

    # bf16 storage for weights (f32 accumulation in-kernel); biases stay f32.
    return (w1s.astype(jnp.bfloat16), b1s, w2s.astype(jnp.bfloat16), b2s,
            w3s.astype(jnp.bfloat16), b3s)


def _reference_forward(obs, action, params):
    """Pure-JAX reference with matching bf16 storage / f32 accumulation."""
    B = obs.shape[0]
    feat = obs.reshape(B, -1)
    w1s, b1s, w2s, b2s, w3s, b3s = params
    Kp, H2 = w1s.shape
    H = H2 // 2

    x = jnp.concatenate([feat, action], axis=1).astype(jnp.bfloat16)
    w1 = w1s[: x.shape[1]].astype(jnp.float32)
    h1 = jnp.maximum(x.astype(jnp.float32) @ w1 + b1s, 0.0)

    def head(idx):
        h = h1[:, idx * H:(idx + 1) * H].astype(jnp.bfloat16).astype(jnp.float32)
        h2 = jnp.maximum(h @ w2s[idx].astype(jnp.float32) + b2s[idx], 0.0)
        w3row = w3s[idx].astype(jnp.float32)
        return jnp.sum(h2 * w3row, axis=-1, keepdims=True) + b3s[idx]

    return head(0), head(1)


if __name__ == "__main__":
    key = jax.random.PRNGKey(0)
    k_obs, k_act, k_par, k_obs2, k_act2 = jax.random.split(key, 5)

    obs_shape = (4, 8)          # FlattenExtractor -> feature_dim = 32
    feature_dim = 4 * 8
    action_dim = 4
    hidden_dim = 256
    params = init_params(k_par, feature_dim, action_dim, hidden_dim)

    def check(B, ko, ka):
        observations = jax.random.normal(ko, (B,) + obs_shape, jnp.float32)
        action = jax.random.normal(ka, (B, action_dim), jnp.float32)
        q1, q2 = sac_critic_forward(observations, action, params)
        q1 = jax.block_until_ready(q1)
        q2 = jax.block_until_ready(q2)
        r1, r2 = _reference_forward(observations, action, params)
        assert q1.shape == (B, 1) and q2.shape == (B, 1)
        assert jnp.allclose(q1, r1, atol=2e-3, rtol=2e-3), (q1, r1)
        assert jnp.allclose(q2, r2, atol=2e-3, rtol=2e-3), (q2, r2)

    check(2, k_obs, k_act)      # tiny single-block path (spec-sized example)
    check(80, k_obs2, k_act2)   # >=2-step "parallel" grid path (v7x megacore split)
    print("KERNEL_OK")
</pallas_src>

<mosaic_0001>
module attributes {stable_mosaic.version = 11 : i64} {
  func.func @_sac_critic_kernel(%arg0: i32, %arg1: memref<16x32xbf16, #tpu.memory_space<vmem>>, %arg2: memref<16x4xbf16, #tpu.memory_space<vmem>>, %arg3: memref<128x512xbf16, #tpu.memory_space<vmem>>, %arg4: memref<1x512xf32, #tpu.memory_space<vmem>>, %arg5: memref<2x256x256xbf16, #tpu.memory_space<vmem>>, %arg6: memref<2x1x256xf32, #tpu.memory_space<vmem>>, %arg7: memref<2x1x256xbf16, #tpu.memory_space<vmem>>, %arg8: memref<2x1x1xf32, #tpu.memory_space<vmem>>, %arg9: memref<16x2xf32, #tpu.memory_space<vmem>>) attributes {dimension_semantics = [#tpu.dimension_semantics<parallel>], iteration_bounds = array<i64: 1>, scalar_prefetch = 0 : i64, scratch_operands = 0 : i64, tpu.core_type = #tpu.core_type<tc>, window_params = [{transform_indices = @transform_0, window_bounds = array<i64: 16, 32>}, {transform_indices = @transform_1, window_bounds = array<i64: 16, 4>}, {pipeline_mode = #tpu.pipeline_mode<synchronous>, transform_indices = @transform_2, window_bounds = array<i64: 128, 512>}, {pipeline_mode = #tpu.pipeline_mode<synchronous>, transform_indices = @transform_3, window_bounds = array<i64: 1, 512>}, {pipeline_mode = #tpu.pipeline_mode<synchronous>, transform_indices = @transform_4, window_bounds = array<i64: 2, 256, 256>}, {pipeline_mode = #tpu.pipeline_mode<synchronous>, transform_indices = @transform_5, window_bounds = array<i64: 2, 1, 256>}, {pipeline_mode = #tpu.pipeline_mode<synchronous>, transform_indices = @transform_6, window_bounds = array<i64: 2, 1, 256>}, {pipeline_mode = #tpu.pipeline_mode<synchronous>, transform_indices = @transform_7, window_bounds = array<i64: 2, 1, 1>}, {transform_indices = @transform_8, window_bounds = array<i64: 16, 2>}]} {
    %c0 = arith.constant 0 : index
    %c0_0 = arith.constant 0 : index
    %0 = vector.load %arg1[%c0, %c0_0] : memref<16x32xbf16, #tpu.memory_space<vmem>>, vector<16x32xbf16>
    %c0_1 = arith.constant 0 : index
    %c0_2 = arith.constant 0 : index
    %1 = vector.load %arg2[%c0_1, %c0_2] : memref<16x4xbf16, #tpu.memory_space<vmem>>, vector<16x4xbf16>
    %cst = arith.constant 0.000000e+00 : bf16
    %2 = vector.broadcast %cst : bf16 to vector<16x92xbf16>
    %3 = tpu.concatenate %0, %1, %2 in 1 : vector<16x32xbf16>, vector<16x4xbf16>, vector<16x92xbf16> -> vector<16x128xbf16>
    %c0_3 = arith.constant 0 : index
    %c0_4 = arith.constant 0 : index
    %4 = vector.load %arg3[%c0_3, %c0_4] : memref<128x512xbf16, #tpu.memory_space<vmem>>, vector<128x512xbf16>
    %cst_5 = arith.constant dense<0.000000e+00> : vector<16x512xf32>
    %5 = tpu.matmul %3, %4, %cst_5 {dimension_numbers = #tpu.dot_dimension_numbers<[1], [0], [0], [1], [0, 0, 1, 1], [], []>} : vector<16x128xbf16>, vector<128x512xbf16>, vector<16x512xf32> -> vector<16x512xf32>
    %c0_6 = arith.constant 0 : index
    %c0_7 = arith.constant 0 : index
    %6 = vector.load %arg4[%c0_6, %c0_7] : memref<1x512xf32, #tpu.memory_space<vmem>>, vector<1x512xf32>
    %7 = vector.broadcast %6 : vector<1x512xf32> to vector<16x512xf32>
    %8 = arith.addf %5, %7 : vector<16x512xf32>
    %cst_8 = arith.constant 0.000000e+00 : f32
    %9 = vector.broadcast %cst_8 : f32 to vector<16x512xf32>
    %10 = arith.maximumf %8, %9 : vector<16x512xf32>
    %11 = vector.extract_strided_slice %10 {offsets = [0, 0], sizes = [16, 256], strides = [1, 1]} : vector<16x512xf32> to vector<16x256xf32>
    %12 = arith.truncf %11 : vector<16x256xf32> to vector<16x256xbf16>
    %c0_9 = arith.constant 0 : index
    %c0_10 = arith.constant 0 : index
    %c0_11 = arith.constant 0 : index
    %13 = vector.load %arg5[%c0_9, %c0_10, %c0_11] : memref<2x256x256xbf16, #tpu.memory_space<vmem>>, vector<1x256x256xbf16>
    %14 = vector.shape_cast %13 : vector<1x256x256xbf16> to vector<256x256xbf16>
    %cst_12 = arith.constant dense<0.000000e+00> : vector<16x256xf32>
    %15 = tpu.matmul %12, %14, %cst_12 {dimension_numbers = #tpu.dot_dimension_numbers<[1], [0], [0], [1], [0, 0, 1, 1], [], []>} : vector<16x256xbf16>, vector<256x256xbf16>, vector<16x256xf32> -> vector<16x256xf32>
    %c0_13 = arith.constant 0 : index
    %c0_14 = arith.constant 0 : index
    %c0_15 = arith.constant 0 : index
    %16 = vector.load %arg6[%c0_13, %c0_14, %c0_15] : memref<2x1x256xf32, #tpu.memory_space<vmem>>, vector<1x1x256xf32>
    %17 = vector.shape_cast %16 : vector<1x1x256xf32> to vector<1x256xf32>
    %18 = vector.broadcast %17 : vector<1x256xf32> to vector<16x256xf32>
    %19 = arith.addf %15, %18 : vector<16x256xf32>
    %cst_16 = arith.constant 0.000000e+00 : f32
    %20 = vector.broadcast %cst_16 : f32 to vector<16x256xf32>
    %21 = arith.maximumf %19, %20 : vector<16x256xf32>
    %c0_17 = arith.constant 0 : index
    %c0_18 = arith.constant 0 : index
    %c0_19 = arith.constant 0 : index
    %22 = vector.load %arg7[%c0_17, %c0_18, %c0_19] : memref<2x1x256xbf16, #tpu.memory_space<vmem>>, vector<1x1x256xbf16>
    %23 = vector.shape_cast %22 : vector<1x1x256xbf16> to vector<1x256xbf16>
    %24 = arith.extf %23 : vector<1x256xbf16> to vector<1x256xf32>
    %25 = vector.broadcast %24 : vector<1x256xf32> to vector<16x256xf32>
    %26 = arith.mulf %21, %25 : vector<16x256xf32>
    %cst_20 = arith.constant dense<0.000000e+00> : vector<16xf32>
    %27 = vector.multi_reduction <add>, %26, %cst_20 [1] : vector<16x256xf32> to vector<16xf32>
    %28 = vector.shape_cast %27 : vector<16xf32> to vector<16x1xf32>
    %c0_21 = arith.constant 0 : index
    %c0_22 = arith.constant 0 : index
    %c0_23 = arith.constant 0 : index
    %29 = vector.load %arg8[%c0_21, %c0_22, %c0_23] : memref<2x1x1xf32, #tpu.memory_space<vmem>>, vector<1x1x1xf32>
    %30 = vector.shape_cast %29 : vector<1x1x1xf32> to vector<1x1xf32>
    %31 = vector.broadcast %30 : vector<1x1xf32> to vector<16x1xf32>
    %32 = arith.addf %28, %31 : vector<16x1xf32>
    %33 = vector.extract_strided_slice %10 {offsets = [0, 256], sizes = [16, 256], strides = [1, 1]} : vector<16x512xf32> to vector<16x256xf32>
    %34 = arith.truncf %33 : vector<16x256xf32> to vector<16x256xbf16>
    %c1 = arith.constant 1 : index
    %c0_24 = arith.constant 0 : index
    %c0_25 = arith.constant 0 : index
    %35 = vector.load %arg5[%c1, %c0_24, %c0_25] : memref<2x256x256xbf16, #tpu.memory_space<vmem>>, vector<1x256x256xbf16>
    %36 = vector.shape_cast %35 : vector<1x256x256xbf16> to vector<256x256xbf16>
    %cst_26 = arith.constant dense<0.000000e+00> : vector<16x256xf32>
    %37 = tpu.matmul %34, %36, %cst_26 {dimension_numbers = #tpu.dot_dimension_numbers<[1], [0], [0], [1], [0, 0, 1, 1], [], []>} : vector<16x256xbf16>, vector<256x256xbf16>, vector<16x256xf32> -> vector<16x256xf32>
    %c1_27 = arith.constant 1 : index
    %c0_28 = arith.constant 0 : index
    %c0_29 = arith.constant 0 : index
    %38 = vector.load %arg6[%c1_27, %c0_28, %c0_29] : memref<2x1x256xf32, #tpu.memory_space<vmem>>, vector<1x1x256xf32>
    %39 = vector.shape_cast %38 : vector<1x1x256xf32> to vector<1x256xf32>
    %40 = vector.broadcast %39 : vector<1x256xf32> to vector<16x256xf32>
    %41 = arith.addf %37, %40 : vector<16x256xf32>
    %cst_30 = arith.constant 0.000000e+00 : f32
    %42 = vector.broadcast %cst_30 : f32 to vector<16x256xf32>
    %43 = arith.maximumf %41, %42 : vector<16x256xf32>
    %c1_31 = arith.constant 1 : index
    %c0_32 = arith.constant 0 : index
    %c0_33 = arith.constant 0 : index
    %44 = vector.load %arg7[%c1_31, %c0_32, %c0_33] : memref<2x1x256xbf16, #tpu.memory_space<vmem>>, vector<1x1x256xbf16>
    %45 = vector.shape_cast %44 : vector<1x1x256xbf16> to vector<1x256xbf16>
    %46 = arith.extf %45 : vector<1x256xbf16> to vector<1x256xf32>
    %47 = vector.broadcast %46 : vector<1x256xf32> to vector<16x256xf32>
    %48 = arith.mulf %43, %47 : vector<16x256xf32>
    %cst_34 = arith.constant dense<0.000000e+00> : vector<16xf32>
    %49 = vector.multi_reduction <add>, %48, %cst_34 [1] : vector<16x256xf32> to vector<16xf32>
    %50 = vector.shape_cast %49 : vector<16xf32> to vector<16x1xf32>
    %c1_35 = arith.constant 1 : index
    %c0_36 = arith.constant 0 : index
    %c0_37 = arith.constant 0 : index
    %51 = vector.load %arg8[%c1_35, %c0_36, %c0_37] : memref<2x1x1xf32, #tpu.memory_space<vmem>>, vector<1x1x1xf32>
    %52 = vector.shape_cast %51 : vector<1x1x1xf32> to vector<1x1xf32>
    %53 = vector.broadcast %52 : vector<1x1xf32> to vector<16x1xf32>
    %54 = arith.addf %50, %53 : vector<16x1xf32>
    %55 = tpu.concatenate %32, %54 in 1 : vector<16x1xf32>, vector<16x1xf32> -> vector<16x2xf32>
    %c0_38 = arith.constant 0 : index
    %c0_39 = arith.constant 0 : index
    %56 = vector.load %arg9[%c0_38, %c0_39] : memref<16x2xf32, #tpu.memory_space<vmem>>, vector<16x2xf32>
    tpu.vector_store %arg9[%c0_38, %c0_39], %55 {strides = array<i32>} : memref<16x2xf32, #tpu.memory_space<vmem>>, vector<16x2xf32>,
    return
  }
  func.func @transform_0(%arg0: i32) -> (i32, i32) {
    %c0_i32 = arith.constant 0 : i32
    %c0_i32_0 = arith.constant 0 : i32
    return %arg0, %c0_i32 : i32, i32
  }
  func.func @transform_1(%arg0: i32) -> (i32, i32) {
    %c0_i32 = arith.constant 0 : i32
    %c0_i32_0 = arith.constant 0 : i32
    return %arg0, %c0_i32 : i32, i32
  }
  func.func @transform_2(%arg0: i32) -> (i32, i32) {
    %c0_i32 = arith.constant 0 : i32
    %c0_i32_0 = arith.constant 0 : i32
    %c0_i32_1 = arith.constant 0 : i32
    return %c0_i32, %c0_i32_0 : i32, i32
  }
  func.func @transform_3(%arg0: i32) -> (i32, i32) {
    %c0_i32 = arith.constant 0 : i32
    %c0_i32_0 = arith.constant 0 : i32
    %c0_i32_1 = arith.constant 0 : i32
    return %c0_i32, %c0_i32_0 : i32, i32
  }
  func.func @transform_4(%arg0: i32) -> (i32, i32, i32) {
    %c0_i32 = arith.constant 0 : i32
    %c0_i32_0 = arith.constant 0 : i32
    %c0_i32_1 = arith.constant 0 : i32
    %c0_i32_2 = arith.constant 0 : i32
    return %c0_i32, %c0_i32_0, %c0_i32_1 : i32, i32, i32
  }
  func.func @transform_5(%arg0: i32) -> (i32, i32, i32) {
    %c0_i32 = arith.constant 0 : i32
    %c0_i32_0 = arith.constant 0 : i32
    %c0_i32_1 = arith.constant 0 : i32
    %c0_i32_2 = arith.constant 0 : i32
    return %c0_i32, %c0_i32_0, %c0_i32_1 : i32, i32, i32
  }
  func.func @transform_6(%arg0: i32) -> (i32, i32, i32) {
    %c0_i32 = arith.constant 0 : i32
    %c0_i32_0 = arith.constant 0 : i32
    %c0_i32_1 = arith.constant 0 : i32
    %c0_i32_2 = arith.constant 0 : i32
    return %c0_i32, %c0_i32_0, %c0_i32_1 : i32, i32, i32
  }
  func.func @transform_7(%arg0: i32) -> (i32, i32, i32) {
    %c0_i32 = arith.constant 0 : i32
    %c0_i32_0 = arith.constant 0 : i32
    %c0_i32_1 = arith.constant 0 : i32
    %c0_i32_2 = arith.constant 0 : i32
    return %c0_i32, %c0_i32_0, %c0_i32_1 : i32, i32, i32
  }
  func.func @transform_8(%arg0: i32) -> (i32, i32) {
    %c0_i32 = arith.constant 0 : i32
    %c0_i32_0 = arith.constant 0 : i32
    return %arg0, %c0_i32 : i32, i32
  }
}

module attributes {stable_mosaic.version = 11 : i64} {
  func.func @_sac_critic_kernel(%arg0: i32, %arg1: memref<16x32xbf16, #tpu.memory_space<vmem>>, %arg2: memref<16x4xbf16, #tpu.memory_space<vmem>>, %arg3: memref<128x512xbf16, #tpu.memory_space<vmem>>, %arg4: memref<1x512xf32, #tpu.memory_space<vmem>>, %arg5: memref<2x256x256xbf16, #tpu.memory_space<vmem>>, %arg6: memref<2x1x256xf32, #tpu.memory_space<vmem>>, %arg7: memref<2x1x256xbf16, #tpu.memory_space<vmem>>, %arg8: memref<2x1x1xf32, #tpu.memory_space<vmem>>, %arg9: memref<16x2xf32, #tpu.memory_space<vmem>>) attributes {dimension_semantics = [#tpu.dimension_semantics<parallel>], iteration_bounds = array<i64: 1>, scalar_prefetch = 0 : i64, scratch_operands = 0 : i64, tpu.core_type = #tpu.core_type<tc>, window_params = [{transform_indices = @transform_0, window_bounds = array<i64: 16, 32>}, {transform_indices = @transform_1, window_bounds = array<i64: 16, 4>}, {pipeline_mode = #tpu.pipeline_mode<synchronous>, transform_indices = @transform_2, window_bounds = array<i64: 128, 512>}, {pipeline_mode = #tpu.pipeline_mode<synchronous>, transform_indices = @transform_3, window_bounds = array<i64: 1, 512>}, {pipeline_mode = #tpu.pipeline_mode<synchronous>, transform_indices = @transform_4, window_bounds = array<i64: 2, 256, 256>}, {pipeline_mode = #tpu.pipeline_mode<synchronous>, transform_indices = @transform_5, window_bounds = array<i64: 2, 1, 256>}, {pipeline_mode = #tpu.pipeline_mode<synchronous>, transform_indices = @transform_6, window_bounds = array<i64: 2, 1, 256>}, {pipeline_mode = #tpu.pipeline_mode<synchronous>, transform_indices = @transform_7, window_bounds = array<i64: 2, 1, 1>}, {transform_indices = @transform_8, window_bounds = array<i64: 16, 2>}]} {
    %c0 = arith.constant 0 : index
    %c0_0 = arith.constant 0 : index
    %0 = vector.load %arg1[%c0, %c0_0] : memref<16x32xbf16, #tpu.memory_space<vmem>>, vector<16x32xbf16>
    %c0_1 = arith.constant 0 : index
    %c0_2 = arith.constant 0 : index
    %1 = vector.load %arg2[%c0_1, %c0_2] : memref<16x4xbf16, #tpu.memory_space<vmem>>, vector<16x4xbf16>
    %cst = arith.constant 0.000000e+00 : bf16
    %2 = vector.broadcast %cst : bf16 to vector<16x92xbf16>
    %3 = tpu.concatenate %0, %1, %2 in 1 : vector<16x32xbf16>, vector<16x4xbf16>, vector<16x92xbf16> -> vector<16x128xbf16>
    %c0_3 = arith.constant 0 : index
    %c0_4 = arith.constant 0 : index
    %4 = vector.load %arg3[%c0_3, %c0_4] : memref<128x512xbf16, #tpu.memory_space<vmem>>, vector<128x512xbf16>
    %cst_5 = arith.constant dense<0.000000e+00> : vector<16x512xf32>
    %5 = tpu.matmul %3, %4, %cst_5 {dimension_numbers = #tpu.dot_dimension_numbers<[1], [0], [0], [1], [0, 0, 1, 1], [], []>} : vector<16x128xbf16>, vector<128x512xbf16>, vector<16x512xf32> -> vector<16x512xf32>
    %c0_6 = arith.constant 0 : index
    %c0_7 = arith.constant 0 : index
    %6 = vector.load %arg4[%c0_6, %c0_7] : memref<1x512xf32, #tpu.memory_space<vmem>>, vector<1x512xf32>
    %7 = vector.broadcast %6 : vector<1x512xf32> to vector<16x512xf32>
    %8 = arith.addf %5, %7 : vector<16x512xf32>
    %cst_8 = arith.constant 0.000000e+00 : f32
    %9 = vector.broadcast %cst_8 : f32 to vector<16x512xf32>
    %10 = arith.maximumf %8, %9 : vector<16x512xf32>
    %11 = vector.extract_strided_slice %10 {offsets = [0, 0], sizes = [16, 256], strides = [1, 1]} : vector<16x512xf32> to vector<16x256xf32>
    %12 = arith.truncf %11 : vector<16x256xf32> to vector<16x256xbf16>
    %c0_9 = arith.constant 0 : index
    %c0_10 = arith.constant 0 : index
    %c0_11 = arith.constant 0 : index
    %13 = vector.load %arg5[%c0_9, %c0_10, %c0_11] : memref<2x256x256xbf16, #tpu.memory_space<vmem>>, vector<1x256x256xbf16>
    %14 = vector.shape_cast %13 : vector<1x256x256xbf16> to vector<256x256xbf16>
    %cst_12 = arith.constant dense<0.000000e+00> : vector<16x256xf32>
    %15 = tpu.matmul %12, %14, %cst_12 {dimension_numbers = #tpu.dot_dimension_numbers<[1], [0], [0], [1], [0, 0, 1, 1], [], []>} : vector<16x256xbf16>, vector<256x256xbf16>, vector<16x256xf32> -> vector<16x256xf32>
    %c0_13 = arith.constant 0 : index
    %c0_14 = arith.constant 0 : index
    %c0_15 = arith.constant 0 : index
    %16 = vector.load %arg6[%c0_13, %c0_14, %c0_15] : memref<2x1x256xf32, #tpu.memory_space<vmem>>, vector<1x1x256xf32>
    %17 = vector.shape_cast %16 : vector<1x1x256xf32> to vector<1x256xf32>
    %18 = vector.broadcast %17 : vector<1x256xf32> to vector<16x256xf32>
    %19 = arith.addf %15, %18 : vector<16x256xf32>
    %cst_16 = arith.constant 0.000000e+00 : f32
    %20 = vector.broadcast %cst_16 : f32 to vector<16x256xf32>
    %21 = arith.maximumf %19, %20 : vector<16x256xf32>
    %c0_17 = arith.constant 0 : index
    %c0_18 = arith.constant 0 : index
    %c0_19 = arith.constant 0 : index
    %22 = vector.load %arg7[%c0_17, %c0_18, %c0_19] : memref<2x1x256xbf16, #tpu.memory_space<vmem>>, vector<1x1x256xbf16>
    %23 = vector.shape_cast %22 : vector<1x1x256xbf16> to vector<1x256xbf16>
    %24 = arith.extf %23 : vector<1x256xbf16> to vector<1x256xf32>
    %25 = vector.broadcast %24 : vector<1x256xf32> to vector<16x256xf32>
    %26 = arith.mulf %21, %25 : vector<16x256xf32>
    %cst_20 = arith.constant dense<0.000000e+00> : vector<16xf32>
    %27 = vector.multi_reduction <add>, %26, %cst_20 [1] : vector<16x256xf32> to vector<16xf32>
    %28 = vector.shape_cast %27 : vector<16xf32> to vector<16x1xf32>
    %c0_21 = arith.constant 0 : index
    %c0_22 = arith.constant 0 : index
    %c0_23 = arith.constant 0 : index
    %29 = vector.load %arg8[%c0_21, %c0_22, %c0_23] : memref<2x1x1xf32, #tpu.memory_space<vmem>>, vector<1x1x1xf32>
    %30 = vector.shape_cast %29 : vector<1x1x1xf32> to vector<1x1xf32>
    %31 = vector.broadcast %30 : vector<1x1xf32> to vector<16x1xf32>
    %32 = arith.addf %28, %31 : vector<16x1xf32>
    %33 = vector.extract_strided_slice %10 {offsets = [0, 256], sizes = [16, 256], strides = [1, 1]} : vector<16x512xf32> to vector<16x256xf32>
    %34 = arith.truncf %33 : vector<16x256xf32> to vector<16x256xbf16>
    %c1 = arith.constant 1 : index
    %c0_24 = arith.constant 0 : index
    %c0_25 = arith.constant 0 : index
    %35 = vector.load %arg5[%c1, %c0_24, %c0_25] : memref<2x256x256xbf16, #tpu.memory_space<vmem>>, vector<1x256x256xbf16>
    %36 = vector.shape_cast %35 : vector<1x256x256xbf16> to vector<256x256xbf16>
    %cst_26 = arith.constant dense<0.000000e+00> : vector<16x256xf32>
    %37 = tpu.matmul %34, %36, %cst_26 {dimension_numbers = #tpu.dot_dimension_numbers<[1], [0], [0], [1], [0, 0, 1, 1], [], []>} : vector<16x256xbf16>, vector<256x256xbf16>, vector<16x256xf32> -> vector<16x256xf32>
    %c1_27 = arith.constant 1 : index
    %c0_28 = arith.constant 0 : index
    %c0_29 = arith.constant 0 : index
    %38 = vector.load %arg6[%c1_27, %c0_28, %c0_29] : memref<2x1x256xf32, #tpu.memory_space<vmem>>, vector<1x1x256xf32>
    %39 = vector.shape_cast %38 : vector<1x1x256xf32> to vector<1x256xf32>
    %40 = vector.broadcast %39 : vector<1x256xf32> to vector<16x256xf32>
    %41 = arith.addf %37, %40 : vector<16x256xf32>
    %cst_30 = arith.constant 0.000000e+00 : f32
    %42 = vector.broadcast %cst_30 : f32 to vector<16x256xf32>
    %43 = arith.maximumf %41, %42 : vector<16x256xf32>
    %c1_31 = arith.constant 1 : index
    %c0_32 = arith.constant 0 : index
    %c0_33 = arith.constant 0 : index
    %44 = vector.load %arg7[%c1_31, %c0_32, %c0_33] : memref<2x1x256xbf16, #tpu.memory_space<vmem>>, vector<1x1x256xbf16>
    %45 = vector.shape_cast %44 : vector<1x1x256xbf16> to vector<1x256xbf16>
    %46 = arith.extf %45 : vector<1x256xbf16> to vector<1x256xf32>
    %47 = vector.broadcast %46 : vector<1x256xf32> to vector<16x256xf32>
    %48 = arith.mulf %43, %47 : vector<16x256xf32>
    %cst_34 = arith.constant dense<0.000000e+00> : vector<16xf32>
    %49 = vector.multi_reduction <add>, %48, %cst_34 [1] : vector<16x256xf32> to vector<16xf32>
    %50 = vector.shape_cast %49 : vector<16xf32> to vector<16x1xf32>
    %c1_35 = arith.constant 1 : index
    %c0_36 = arith.constant 0 : index
    %c0_37 = arith.constant 0 : index
    %51 = vector.load %arg8[%c1_35, %c0_36, %c0_37] : memref<2x1x1xf32, #tpu.memory_space<vmem>>, vector<1x1x1xf32>
    %52 = vector.shape_cast %51 : vector<1x1x1xf32> to vector<1x1xf32>
    %53 = vector.broadcast %52 : vector<1x1xf32> to vector<16x1xf32>
    %54 = arith.addf %50, %53 : vector<16x1xf32>
    %55 = tpu.concatenate %32, %54 in 1 : vector<16x1xf32>, vector<16x1xf32> -> vector<16x2xf32>
    %c0_38 = arith.constant 0 : index
    %c0_39 = arith.constant 0 : index
    %56 = vector.load %arg9[%c0_38, %c0_39] : memref<16x2xf32, #tpu.memory_space<vmem>>, vector<16x2xf32>
    tpu.vector_store %arg9[%c0_38, %c0_39], %55 {strides = array<i32>} : memref<16x2xf32, #tpu.memory_space<vmem>>, vector<16x2xf32>,
    return
  }
  func.func @transform_0(%arg0: i32) -> (i32, i32) {
    %c0_i32 = arith.constant 0 : i32
    %c0_i32_0 = arith.constant 0 : i32
    return %arg0, %c0_i32 : i32, i32
  }
  func.func @transform_1(%arg0: i32) -> (i32, i32) {
    %c0_i32 = arith.constant 0 : i32
    %c0_i32_0 = arith.constant 0 : i32
    return %arg0, %c0_i32 : i32, i32
  }
  func.func @transform_2(%arg0: i32) -> (i32, i32) {
    %c0_i32 = arith.constant 0 : i32
    %c0_i32_0 = arith.constant 0 : i32
    %c0_i32_1 = arith.constant 0 : i32
    return %c0_i32, %c0_i32_0 : i32, i32
  }
  func.func @transform_3(%arg0: i32) -> (i32, i32) {
    %c0_i32 = arith.constant 0 : i32
    %c0_i32_0 = arith.constant 0 : i32
    %c0_i32_1 = arith.constant 0 : i32
    return %c0_i32, %c0_i32_0 : i32, i32
  }
  func.func @transform_4(%arg0: i32) -> (i32, i32, i32) {
    %c0_i32 = arith.constant 0 : i32
    %c0_i32_0 = arith.constant 0 : i32
    %c0_i32_1 = arith.constant 0 : i32
    %c0_i32_2 = arith.constant 0 : i32
    return %c0_i32, %c0_i32_0, %c0_i32_1 : i32, i32, i32
  }
  func.func @transform_5(%arg0: i32) -> (i32, i32, i32) {
    %c0_i32 = arith.constant 0 : i32
    %c0_i32_0 = arith.constant 0 : i32
    %c0_i32_1 = arith.constant 0 : i32
    %c0_i32_2 = arith.constant 0 : i32
    return %c0_i32, %c0_i32_0, %c0_i32_1 : i32, i32, i32
  }
  func.func @transform_6(%arg0: i32) -> (i32, i32, i32) {
    %c0_i32 = arith.constant 0 : i32
    %c0_i32_0 = arith.constant 0 : i32
    %c0_i32_1 = arith.constant 0 : i32
    %c0_i32_2 = arith.constant 0 : i32
    return %c0_i32, %c0_i32_0, %c0_i32_1 : i32, i32, i32
  }
  func.func @transform_7(%arg0: i32) -> (i32, i32, i32) {
    %c0_i32 = arith.constant 0 : i32
    %c0_i32_0 = arith.constant 0 : i32
    %c0_i32_1 = arith.constant 0 : i32
    %c0_i32_2 = arith.constant 0 : i32
    return %c0_i32, %c0_i32_0, %c0_i32_1 : i32, i32, i32
  }
  func.func @transform_8(%arg0: i32) -> (i32, i32) {
    %c0_i32 = arith.constant 0 : i32
    %c0_i32_0 = arith.constant 0 : i32
    return %arg0, %c0_i32 : i32, i32
  }
}

</mosaic_0001>

<llo_original>
// kernel: tpu_custom_call.1
$region0: #{tpu_custom_call.1}
  #allocation0 [shape = 'u32[]', space=smem, size = 0x4, offset = 0x4, fixed_abs, tag = 'smem constant byte address 0x4 - core index']
  #allocation1 [shape = 'u32[144,128]{1,0:T(1,128)}', space=vmem, size = 0x12000, scoped, tag = 'internal scratch']
  %s0 = inlined_call_operand.vmem [shape: bf16[16,32], index: 0, kind: input, shape index: {}]
  %s1 = inlined_call_operand.vmem [shape: bf16[16,4], index: 1, kind: input, shape index: {}]
  %s2 = inlined_call_operand.hbm [shape: bf16[128,512], index: 2, kind: input, shape index: {}]
  %s3 = inlined_call_operand.vmem [shape: f32[1,512], index: 3, kind: input, shape index: {}]
  %s4 = inlined_call_operand.hbm [shape: bf16[2,256,256], index: 4, kind: input, shape index: {}]
  %s5 = inlined_call_operand.vmem [shape: f32[2,1,256], index: 5, kind: input, shape index: {}]
  %s6 = inlined_call_operand.vmem [shape: bf16[2,1,256], index: 6, kind: input, shape index: {}]
  %s7 = inlined_call_operand.vmem [shape: f32[2,1,1], index: 7, kind: input, shape index: {}]
  %s8 = inlined_call_operand.vmem [shape: f32[16,2], index: 8, kind: output, shape index: {}]
  %s9 = sld [smem:[#allocation0]]
  $region50: #{tpu_custom_call.1} parent=0
    _
  %s11 = ssub.s32 1, %s9
  %s12 = scalar_select 0, %s11, %s9
  $region1: #{tpu_custom_call.1} parent=0
    #allocation2 [shape = 'u8[131072]{0}', space=vmem, size = 0x20000, scoped, tag = 'input window, operand 2, single buffered']
    #allocation3 [shape = 's32[1]{0}', space=sflag, size = 0x4, scoped, tag = 'scoped memory for tpu_custom_call.1']
    #allocation4 [shape = 'u8[262144]{0}', space=vmem, size = 0x40000, scoped, tag = 'input window, operand 4, single buffered']
    #allocation5 [shape = 's32[1]{0}', space=sflag, size = 0x4, scoped, tag = 'scoped memory for tpu_custom_call.1']
    %13 = vsyncpa [#allocation3], 0
    %14 = vsyncpa [#allocation5], 0
    // Predicated region
    $region2: #{tpu_custom_call.1} parent=1 // pred_check
      _
    $region3: #{tpu_custom_call.1} parent=1 // pred_check_branch
      %16 = sbr.rel (0) target = $region5
    $region4: #{tpu_custom_call.1} parent=1 // pred_region
      _
    $region5: #{tpu_custom_call.1} parent=1 // pred_fallthru
      _
    // Predicated region
    $region6: #{tpu_custom_call.1} parent=1 // pred_check
      _
    $region7: #{tpu_custom_call.1} parent=1 // pred_check_branch
      %18 = sbr.rel (0) target = $region9
    $region8: #{tpu_custom_call.1} parent=1 // pred_region
      _
    $region9: #{tpu_custom_call.1} parent=1 // pred_fallthru
      _
    // Predicated region
    $region10: #{tpu_custom_call.1} parent=1 // pred_check
      _
    $region11: #{tpu_custom_call.1} parent=1 // pred_check_branch
      %20 = sbr.rel (0) target = $region13
    $region12: #{tpu_custom_call.1} parent=1 // pred_region
      %s22 = ssub.s32 4096, 4096
      %23 = vsyncadd [#allocation3], %s22
      %s24 = sshll.u32 [#allocation2], 4
      %s25 = int_to_ptr.vmem [resolvable:$true] %s24
      %30 = dma.hbm_to_vmem [thread:$0]  %s2, 4096, %s25, [#allocation3], 256, 256, 16
    $region13: #{tpu_custom_call.1} parent=1 // pred_fallthru
      _
    // Predicated region
    $region14: #{tpu_custom_call.1} parent=1 // pred_check
      _
    $region15: #{tpu_custom_call.1} parent=1 // pred_check_branch
      %32 = sbr.rel (0) target = $region17
    $region16: #{tpu_custom_call.1} parent=1 // pred_region
      _
    $region17: #{tpu_custom_call.1} parent=1 // pred_fallthru
      _
    // Predicated region
    $region18: #{tpu_custom_call.1} parent=1 // pred_check
      _
    $region19: #{tpu_custom_call.1} parent=1 // pred_check_branch
      %34 = sbr.rel (0) target = $region21
    $region20: #{tpu_custom_call.1} parent=1 // pred_region
      %s36 = ssub.s32 8192, 8192
      %37 = vsyncadd [#allocation5], %s36
      %s38 = sshll.u32 [#allocation4], 4
      %s39 = int_to_ptr.vmem [resolvable:$true] %s38
      %44 = dma.hbm_to_vmem [thread:$0]  %s4, 8192, %s39, [#allocation5], 128, 128, 8
    $region21: #{tpu_custom_call.1} parent=1 // pred_fallthru
      _
    // Predicated region
    $region22: #{tpu_custom_call.1} parent=1 // pred_check
      _
    $region23: #{tpu_custom_call.1} parent=1 // pred_check_branch
      %46 = sbr.rel (0) target = $region25
    $region24: #{tpu_custom_call.1} parent=1 // pred_region
      _
    $region25: #{tpu_custom_call.1} parent=1 // pred_fallthru
      _
    // Predicated region
    $region26: #{tpu_custom_call.1} parent=1 // pred_check
      _
    $region27: #{tpu_custom_call.1} parent=1 // pred_check_branch
      %48 = sbr.rel (0) target = $region29
    $region28: #{tpu_custom_call.1} parent=1 // pred_region
      _
    $region29: #{tpu_custom_call.1} parent=1 // pred_fallthru
      _
    // Predicated region
    $region30: #{tpu_custom_call.1} parent=1 // pred_check
      _
    $region31: #{tpu_custom_call.1} parent=1 // pred_check_branch
      %50 = sbr.rel (0) target = $region33
    $region32: #{tpu_custom_call.1} parent=1 // pred_region
      _
    $region33: #{tpu_custom_call.1} parent=1 // pred_fallthru
      _
    // Predicated region
    $region34: #{tpu_custom_call.1} parent=1 // pred_check
      _
    $region35: #{tpu_custom_call.1} parent=1 // pred_check_branch
      %52 = sbr.rel (0) target = $region37
    $region36: #{tpu_custom_call.1} parent=1 // pred_region
      %53 = dma.done [#allocation3], 4096
    $region37: #{tpu_custom_call.1} parent=1 // pred_fallthru
      _
    // Predicated region
    $region38: #{tpu_custom_call.1} parent=1 // pred_check
      _
    $region39: #{tpu_custom_call.1} parent=1 // pred_check_branch
      %55 = sbr.rel (0) target = $region41
    $region40: #{tpu_custom_call.1} parent=1 // pred_region
      %56 = dma.done [#allocation5], 8192
    $region41: #{tpu_custom_call.1} parent=1 // pred_fallthru
      _
    %v58 = vld [vmem:[%s0] sm:$0xf]
    %v59 = vld [vmem:[%s0 + $0x4] sm:$0xf]
    %v60 = vld [vmem:[%s1] sm:$0xf]
    %v61 = vld [vmem:[%s1 + $0x4] sm:$0xf]
    %v64 = vunpack.c.l.b16 %v58
    %v65 = vunpack.c.l.b16 %v59
    %v66 = vpack.c.b16 %v65, %v64
    %v69 = vunpack.c.l.b16 %v60
    %v70 = vunpack.c.l.b16 %v61
    %v71 = vpack.c.b16 %v70, %v69
    %72 = vrot.lane.b32.xlu0 %v71, 32
    %v73 = vpop.permute.xlu0 %72
    %vm74 = vcmask 261120
    %v77 = vsel %vm74, %v66, %v73
    %vm78 = vcmask 293888
    %v80 = vsel %vm78, %v77, 0
    %v82 = vld [vmem:[#allocation2] sm:$0xff]
    %v83 = vld [vmem:[#allocation2 + $0x8] sm:$0xff]
    %v84 = vld [vmem:[#allocation2 + $0x10] sm:$0xff]
    %v85 = vld [vmem:[#allocation2 + $0x18] sm:$0xff]
    %v86 = vld [vmem:[#allocation2 + $0x20] sm:$0xff]
    %v87 = vld [vmem:[#allocation2 + $0x28] sm:$0xff]
    %v88 = vld [vmem:[#allocation2 + $0x30] sm:$0xff]
    %v89 = vld [vmem:[#allocation2 + $0x38] sm:$0xff]
    %v90 = vld [vmem:[#allocation2 + $0x40] sm:$0xff]
    %v91 = vld [vmem:[#allocation2 + $0x48] sm:$0xff]
    %v92 = vld [vmem:[#allocation2 + $0x50] sm:$0xff]
    %v93 = vld [vmem:[#allocation2 + $0x58] sm:$0xff]
    %v94 = vld [vmem:[#allocation2 + $0x60] sm:$0xff]
    %v95 = vld [vmem:[#allocation2 + $0x68] sm:$0xff]
    %v96 = vld [vmem:[#allocation2 + $0x70] sm:$0xff]
    %v97 = vld [vmem:[#allocation2 + $0x78] sm:$0xff]
    %v98 = vld [vmem:[#allocation2 + $0x80] sm:$0xff]
    %v99 = vld [vmem:[#allocation2 + $0x88] sm:$0xff]
    %v100 = vld [vmem:[#allocation2 + $0x90] sm:$0xff]
    %v101 = vld [vmem:[#allocation2 + $0x98] sm:$0xff]
    %v102 = vld [vmem:[#allocation2 + $0xa0] sm:$0xff]
    %v103 = vld [vmem:[#allocation2 + $0xa8] sm:$0xff]
    %v104 = vld [vmem:[#allocation2 + $0xb0] sm:$0xff]
    %v105 = vld [vmem:[#allocation2 + $0xb8] sm:$0xff]
    %v106 = vld [vmem:[#allocation2 + $0xc0] sm:$0xff]
    %v107 = vld [vmem:[#allocation2 + $0xc8] sm:$0xff]
    %v108 = vld [vmem:[#allocation2 + $0xd0] sm:$0xff]
    %v109 = vld [vmem:[#allocation2 + $0xd8] sm:$0xff]
    %v110 = vld [vmem:[#allocation2 + $0xe0] sm:$0xff]
    %v111 = vld [vmem:[#allocation2 + $0xe8] sm:$0xff]
    %v112 = vld [vmem:[#allocation2 + $0xf0] sm:$0xff]
    %v113 = vld [vmem:[#allocation2 + $0xf8] sm:$0xff]
    %v114 = vld [vmem:[%s3] sm:$0xf]
    %v116 = vlaneseq
    %v117 = vshrl.u32 %v116, 7
    %v118 = vsub.s32 0, %v117
    %v119 = vrot.slane %v114, %v118
    %v120 = vlaneseq
    %v121 = vshrl.u32 %v120, 7
    %v122 = vsub.s32 1, %v121
    %v123 = vrot.slane %v114, %v122
    %v124 = vlaneseq
    %v125 = vshrl.u32 %v124, 7
    %v126 = vsub.s32 2, %v125
    %v127 = vrot.slane %v114, %v126
    %v128 = vlaneseq
    %v129 = vshrl.u32 %v128, 7
    %v130 = vsub.s32 3, %v129
    %v131 = vrot.slane %v114, %v130
    %v168 = vunpack.c.l.b16 %v82
    %v169 = vunpack.c.h.b16 %v82
    %v170 = vunpack.c.l.b16 %v83
    %v171 = vunpack.c.h.b16 %v83
    %v172 = vunpack.c.l.b16 %v84
    %v173 = vunpack.c.h.b16 %v84
    %v174 = vunpack.c.l.b16 %v85
    %v175 = vunpack.c.h.b16 %v85
    %v176 = vunpack.c.l.b16 %v86
    %v177 = vunpack.c.h.b16 %v86
    %v178 = vunpack.c.l.b16 %v87
    %v179 = vunpack.c.h.b16 %v87
    %v180 = vunpack.c.l.b16 %v88
    %v181 = vunpack.c.h.b16 %v88
    %v182 = vunpack.c.l.b16 %v89
    %v183 = vunpack.c.h.b16 %v89
    %v184 = vunpack.c.l.b16 %v90
    %v185 = vunpack.c.h.b16 %v90
    %v186 = vunpack.c.l.b16 %v91
    %v187 = vunpack.c.h.b16 %v91
    %v188 = vunpack.c.l.b16 %v92
    %v189 = vunpack.c.h.b16 %v92
    %v190 = vunpack.c.l.b16 %v93
    %v191 = vunpack.c.h.b16 %v93
    %v192 = vunpack.c.l.b16 %v94
    %v193 = vunpack.c.h.b16 %v94
    %v194 = vunpack.c.l.b16 %v95
    %v195 = vunpack.c.h.b16 %v95
    %v196 = vunpack.c.l.b16 %v96
    %v197 = vunpack.c.h.b16 %v96
    %v198 = vunpack.c.l.b16 %v97
    %v199 = vunpack.c.h.b16 %v97
    %v200 = vunpack.c.l.b16 %v98
    %v201 = vunpack.c.h.b16 %v98
    %v202 = vunpack.c.l.b16 %v99
    %v203 = vunpack.c.h.b16 %v99
    %v204 = vunpack.c.l.b16 %v100
    %v205 = vunpack.c.h.b16 %v100
    %v206 = vunpack.c.l.b16 %v101
    %v207 = vunpack.c.h.b16 %v101
    %v208 = vunpack.c.l.b16 %v102
    %v209 = vunpack.c.h.b16 %v102
    %v210 = vunpack.c.l.b16 %v103
    %v211 = vunpack.c.h.b16 %v103
    %v212 = vunpack.c.l.b16 %v104
    %v213 = vunpack.c.h.b16 %v104
    %v214 = vunpack.c.l.b16 %v105
    %v215 = vunpack.c.h.b16 %v105
    %v216 = vunpack.c.l.b16 %v106
    %v217 = vunpack.c.h.b16 %v106
    %v218 = vunpack.c.l.b16 %v107
    %v219 = vunpack.c.h.b16 %v107
    %v220 = vunpack.c.l.b16 %v108
    %v221 = vunpack.c.h.b16 %v108
    %v222 = vunpack.c.l.b16 %v109
    %v223 = vunpack.c.h.b16 %v109
    %v224 = vunpack.c.l.b16 %v110
    %v225 = vunpack.c.h.b16 %v110
    %v226 = vunpack.c.l.b16 %v111
    %v227 = vunpack.c.h.b16 %v111
    %v228 = vunpack.c.l.b16 %v112
    %v229 = vunpack.c.h.b16 %v112
    %v230 = vunpack.c.l.b16 %v113
    %v231 = vunpack.c.h.b16 %v113
    %v232 = vpack.c.b16 %v172, %v168
    %v233 = vpack.c.b16 %v173, %v169
    %v234 = vpack.c.b16 %v174, %v170
    %v235 = vpack.c.b16 %v175, %v171
    %v236 = vpack.c.b16 %v180, %v176
    %v237 = vpack.c.b16 %v181, %v177
    %v238 = vpack.c.b16 %v182, %v178
    %v239 = vpack.c.b16 %v183, %v179
    %v240 = vpack.c.b16 %v188, %v184
    %v241 = vpack.c.b16 %v189, %v185
    %v242 = vpack.c.b16 %v190, %v186
    %v243 = vpack.c.b16 %v191, %v187
    %v244 = vpack.c.b16 %v196, %v192
    %v245 = vpack.c.b16 %v197, %v193
    %v246 = vpack.c.b16 %v198, %v194
    %v247 = vpack.c.b16 %v199, %v195
    %v248 = vpack.c.b16 %v204, %v200
    %v249 = vpack.c.b16 %v205, %v201
    %v250 = vpack.c.b16 %v206, %v202
    %v251 = vpack.c.b16 %v207, %v203
    %v252 = vpack.c.b16 %v212, %v208
    %v253 = vpack.c.b16 %v213, %v209
    %v254 = vpack.c.b16 %v214, %v210
    %v255 = vpack.c.b16 %v215, %v211
    %v256 = vpack.c.b16 %v220, %v216
    %v257 = vpack.c.b16 %v221, %v217
    %v258 = vpack.c.b16 %v222, %v218
    %v259 = vpack.c.b16 %v223, %v219
    %v260 = vpack.c.b16 %v228, %v224
    %v261 = vpack.c.b16 %v229, %v225
    %v262 = vpack.c.b16 %v230, %v226
    %v263 = vpack.c.b16 %v231, %v227
    %296 = vmatprep.subr.bf16.mxu0 %v261
    %297 = vmatpush1.bf16.msra.mxu0 %v260
    %298 = vmatprep.subr.bf16.mxu0 %v257
    %299 = vmatpush1.bf16.msra.mxu0 %v256
    %300 = vmatprep.subr.bf16.mxu0 %v253
    %301 = vmatpush1.bf16.msra.mxu0 %v252
    %302 = vmatprep.subr.bf16.mxu0 %v249
    %303 = vmatpush1.bf16.msra.mxu0 %v248
    %304 = vmatprep.subr.bf16.mxu0 %v245
    %305 = vmatpush1.bf16.msra.mxu0 %v244
    %306 = vmatprep.subr.bf16.mxu0 %v241
    %307 = vmatpush1.bf16.msra.mxu0 %v240
    %308 = vmatprep.subr.bf16.mxu0 %v237
    %309 = vmatpush1.bf16.msra.mxu0 %v236
    %310 = vmatprep.subr.bf16.mxu0 %v233
    %311 = vmatpush1.bf16.msra.mxu0 %v232
    %312 = vmatprep.subr.bf16.mxu0 0
    %313 = vmatpush2.bf16.msra.mxu0 0
    %314 = vmatprep.subr.bf16.mxu0 0
    %315 = vmatpush2.bf16.msra.mxu0 0
    %316 = vmatprep.subr.bf16.mxu0 0
    %317 = vmatpush2.bf16.msra.mxu0 0
    %318 = vmatprep.subr.bf16.mxu0 0
    %319 = vmatpush2.bf16.msra.mxu0 0
    %320 = vmatprep.subr.bf16.mxu0 0
    %321 = vmatpush2.bf16.msra.mxu0 0
    %322 = vmatprep.subr.bf16.mxu0 0
    %323 = vmatpush2.bf16.msra.mxu0 0
    %324 = vmatprep.subr.bf16.mxu0 0
    %325 = vmatpush2.bf16.msra.mxu0 0
    %326 = vmatprep.subr.bf16.mxu0 0
    %327 = vmatpush2.bf16.msra.mxu0 0
    %328 = vmatprep.mubr.bf16.mxu0 0
    %329 = vmatmul.mubr.bf16.gmra.mxu0 %v80
    %v330 = vpop.f32.mrf.mxu0
    %v331 = vadd.f32 %v119, %v330
    %v332 = vpop.f32.mrf.mxu0
    %v333 = vadd.f32 %v123, %v332
    %v334 = vpop.f32.mrf.mxu0
    %v335 = vadd.f32 %v119, %v334
    %v336 = vpop.f32.mrf.mxu0
    %v337 = vadd.f32 %v123, %v336
    %338 = vdwg.mxu0
    %339 = vmatprep.subr.bf16.mxu0 %v263
    %340 = vmatpush1.bf16.msra.mxu0 %v262
    %341 = vmatprep.subr.bf16.mxu0 %v259
    %342 = vmatpush1.bf16.msra.mxu0 %v258
    %343 = vmatprep.subr.bf16.mxu0 %v255
    %344 = vmatpush1.bf16.msra.mxu0 %v254
    %345 = vmatprep.subr.bf16.mxu0 %v251
    %346 = vmatpush1.bf16.msra.mxu0 %v250
    %347 = vmatprep.subr.bf16.mxu0 %v247
    %348 = vmatpush1.bf16.msra.mxu0 %v246
    %349 = vmatprep.subr.bf16.mxu0 %v243
    %350 = vmatpush1.bf16.msra.mxu0 %v242
    %351 = vmatprep.subr.bf16.mxu0 %v239
    %352 = vmatpush1.bf16.msra.mxu0 %v238
    %353 = vmatprep.subr.bf16.mxu0 %v235
    %354 = vmatpush1.bf16.msra.mxu0 %v234
    %355 = vmatprep.subr.bf16.mxu0 0
    %356 = vmatpush2.bf16.msra.mxu0 0
    %357 = vmatprep.subr.bf16.mxu0 0
    %358 = vmatpush2.bf16.msra.mxu0 0
    %359 = vmatprep.subr.bf16.mxu0 0
    %360 = vmatpush2.bf16.msra.mxu0 0
    %361 = vmatprep.subr.bf16.mxu0 0
    %362 = vmatpush2.bf16.msra.mxu0 0
    %363 = vmatprep.subr.bf16.mxu0 0
    %364 = vmatpush2.bf16.msra.mxu0 0
    %365 = vmatprep.subr.bf16.mxu0 0
    %366 = vmatpush2.bf16.msra.mxu0 0
    %367 = vmatprep.subr.bf16.mxu0 0
    %368 = vmatpush2.bf16.msra.mxu0 0
    %369 = vmatprep.subr.bf16.mxu0 0
    %370 = vmatpush2.bf16.msra.mxu0 0
    %371 = vmatprep.mubr.bf16.mxu0 0
    %372 = vmatmul.mubr.bf16.gmra.mxu0 %v80
    %v373 = vpop.f32.mrf.mxu0
    %v374 = vadd.f32 %v127, %v373
    %v375 = vpop.f32.mrf.mxu0
    %v376 = vadd.f32 %v131, %v375
    %v377 = vpop.f32.mrf.mxu0
    %v378 = vadd.f32 %v127, %v377
    %v379 = vpop.f32.mrf.mxu0
    %v380 = vadd.f32 %v131, %v379
    %381 = vdwg.mxu0
    %v382 = vmax.f32 %v331, 0.0
    %v383 = vmax.f32 %v333, 0.0
    %v384 = vmax.f32 %v374, 0.0
    %v385 = vmax.f32 %v376, 0.0
    %v386 = vmax.f32 %v335, 0.0
    %v387 = vmax.f32 %v337, 0.0
    %v388 = vmax.f32 %v378, 0.0
    %v389 = vmax.f32 %v380, 0.0
    %v390 = vpack.c.bf16 %v386, %v382
    %v391 = vpack.c.bf16 %v387, %v383
    %v392 = vld [vmem:[#allocation4] sm:$0xff]
    %v393 = vld [vmem:[#allocation4 + $0x8] sm:$0xff]
    %v394 = vld [vmem:[#allocation4 + $0x10] sm:$0xff]
    %v395 = vld [vmem:[#allocation4 + $0x18] sm:$0xff]
    %v396 = vld [vmem:[#allocation4 + $0x20] sm:$0xff]
    %v397 = vld [vmem:[#allocation4 + $0x28] sm:$0xff]
    %v398 = vld [vmem:[#allocation4 + $0x30] sm:$0xff]
    %v399 = vld [vmem:[#allocation4 + $0x38] sm:$0xff]
    %v400 = vld [vmem:[#allocation4 + $0x40] sm:$0xff]
    %v401 = vld [vmem:[#allocation4 + $0x48] sm:$0xff]
    %v402 = vld [vmem:[#allocation4 + $0x50] sm:$0xff]
    %v403 = vld [vmem:[#allocation4 + $0x58] sm:$0xff]
    %v404 = vld [vmem:[#allocation4 + $0x60] sm:$0xff]
    %v405 = vld [vmem:[#allocation4 + $0x68] sm:$0xff]
    %v406 = vld [vmem:[#allocation4 + $0x70] sm:$0xff]
    %v407 = vld [vmem:[#allocation4 + $0x78] sm:$0xff]
    %v408 = vld [vmem:[#allocation4 + $0x80] sm:$0xff]
    %v409 = vld [vmem:[#allocation4 + $0x88] sm:$0xff]
    %v410 = vld [vmem:[#allocation4 + $0x90] sm:$0xff]
    %v411 = vld [vmem:[#allocation4 + $0x98] sm:$0xff]
    %v412 = vld [vmem:[#allocation4 + $0xa0] sm:$0xff]
    %v413 = vld [vmem:[#allocation4 + $0xa8] sm:$0xff]
    %v414 = vld [vmem:[#allocation4 + $0xb0] sm:$0xff]
    %v415 = vld [vmem:[#allocation4 + $0xb8] sm:$0xff]
    %v416 = vld [vmem:[#allocation4 + $0xc0] sm:$0xff]
    %v417 = vld [vmem:[#allocation4 + $0xc8] sm:$0xff]
    %v418 = vld [vmem:[#allocation4 + $0xd0] sm:$0xff]
    %v419 = vld [vmem:[#allocation4 + $0xd8] sm:$0xff]
    %v420 = vld [vmem:[#allocation4 + $0xe0] sm:$0xff]
    %v421 = vld [vmem:[#allocation4 + $0xe8] sm:$0xff]
    %v422 = vld [vmem:[#allocation4 + $0xf0] sm:$0xff]
    %v423 = vld [vmem:[#allocation4 + $0xf8] sm:$0xff]
    %v424 = vld [vmem:[%s5] sm:$0x3]
    %v426 = vlaneseq
    %v427 = vshrl.u32 %v426, 7
    %v428 = vsub.s32 0, %v427
    %v429 = vrot.slane %v424, %v428
    %v430 = vlaneseq
    %v431 = vshrl.u32 %v430, 7
    %v432 = vsub.s32 1, %v431
    %v433 = vrot.slane %v424, %v432
    %v468 = vunpack.c.l.b16 %v392
    %v469 = vunpack.c.h.b16 %v392
    %v470 = vunpack.c.l.b16 %v393
    %v471 = vunpack.c.h.b16 %v393
    %v472 = vunpack.c.l.b16 %v394
    %v473 = vunpack.c.h.b16 %v394
    %v474 = vunpack.c.l.b16 %v395
    %v475 = vunpack.c.h.b16 %v395
    %v476 = vunpack.c.l.b16 %v396
    %v477 = vunpack.c.h.b16 %v396
    %v478 = vunpack.c.l.b16 %v397
    %v479 = vunpack.c.h.b16 %v397
    %v480 = vunpack.c.l.b16 %v398
    %v481 = vunpack.c.h.b16 %v398
    %v482 = vunpack.c.l.b16 %v399
    %v483 = vunpack.c.h.b16 %v399
    %v484 = vunpack.c.l.b16 %v400
    %v485 = vunpack.c.h.b16 %v400
    %v486 = vunpack.c.l.b16 %v401
    %v487 = vunpack.c.h.b16 %v401
    %v488 = vunpack.c.l.b16 %v402
    %v489 = vunpack.c.h.b16 %v402
    %v490 = vunpack.c.l.b16 %v403
    %v491 = vunpack.c.h.b16 %v403
    %v492 = vunpack.c.l.b16 %v404
    %v493 = vunpack.c.h.b16 %v404
    %v494 = vunpack.c.l.b16 %v405
    %v495 = vunpack.c.h.b16 %v405
    %v496 = vunpack.c.l.b16 %v406
    %v497 = vunpack.c.h.b16 %v406
    %v498 = vunpack.c.l.b16 %v407
    %v499 = vunpack.c.h.b16 %v407
    %v500 = vunpack.c.l.b16 %v408
    %v501 = vunpack.c.h.b16 %v408
    %v502 = vunpack.c.l.b16 %v409
    %v503 = vunpack.c.h.b16 %v409
    %v504 = vunpack.c.l.b16 %v410
    %v505 = vunpack.c.h.b16 %v410
    %v506 = vunpack.c.l.b16 %v411
    %v507 = vunpack.c.h.b16 %v411
    %v508 = vunpack.c.l.b16 %v412
    %v509 = vunpack.c.h.b16 %v412
    %v510 = vunpack.c.l.b16 %v413
    %v511 = vunpack.c.h.b16 %v413
    %v512 = vunpack.c.l.b16 %v414
    %v513 = vunpack.c.h.b16 %v414
    %v514 = vunpack.c.l.b16 %v415
    %v515 = vunpack.c.h.b16 %v415
    %v516 = vunpack.c.l.b16 %v416
    %v517 = vunpack.c.h.b16 %v416
    %v518 = vunpack.c.l.b16 %v417
    %v519 = vunpack.c.h.b16 %v417
    %v520 = vunpack.c.l.b16 %v418
    %v521 = vunpack.c.h.b16 %v418
    %v522 = vunpack.c.l.b16 %v419
    %v523 = vunpack.c.h.b16 %v419
    %v524 = vunpack.c.l.b16 %v420
    %v525 = vunpack.c.h.b16 %v420
    %v526 = vunpack.c.l.b16 %v421
    %v527 = vunpack.c.h.b16 %v421
    %v528 = vunpack.c.l.b16 %v422
    %v529 = vunpack.c.h.b16 %v422
    %v530 = vunpack.c.l.b16 %v423
    %v531 = vunpack.c.h.b16 %v423
    %v532 = vpack.c.b16 %v470, %v468
    %v533 = vpack.c.b16 %v471, %v469
    %v534 = vpack.c.b16 %v474, %v472
    %v535 = vpack.c.b16 %v475, %v473
    %v536 = vpack.c.b16 %v478, %v476
    %v537 = vpack.c.b16 %v479, %v477
    %v538 = vpack.c.b16 %v482, %v480
    %v539 = vpack.c.b16 %v483, %v481
    %v540 = vpack.c.b16 %v486, %v484
    %v541 = vpack.c.b16 %v487, %v485
    %v542 = vpack.c.b16 %v490, %v488
    %v543 = vpack.c.b16 %v491, %v489
    %v544 = vpack.c.b16 %v494, %v492
    %v545 = vpack.c.b16 %v495, %v493
    %v546 = vpack.c.b16 %v498, %v496
    %v547 = vpack.c.b16 %v499, %v497
    %v548 = vpack.c.b16 %v502, %v500
    %v549 = vpack.c.b16 %v503, %v501
    %v550 = vpack.c.b16 %v506, %v504
    %v551 = vpack.c.b16 %v507, %v505
    %v552 = vpack.c.b16 %v510, %v508
    %v553 = vpack.c.b16 %v511, %v509
    %v554 = vpack.c.b16 %v514, %v512
    %v555 = vpack.c.b16 %v515, %v513
    %v556 = vpack.c.b16 %v518, %v516
    %v557 = vpack.c.b16 %v519, %v517
    %v558 = vpack.c.b16 %v522, %v520
    %v559 = vpack.c.b16 %v523, %v521
    %v560 = vpack.c.b16 %v526, %v524
    %v561 = vpack.c.b16 %v527, %v525
    %v562 = vpack.c.b16 %v530, %v528
    %v563 = vpack.c.b16 %v531, %v529
    %596 = vmatprep.subr.bf16.mxu0 %v547
    %597 = vmatpush1.bf16.msra.mxu0 %v546
    %598 = vmatprep.subr.bf16.mxu0 %v545
    %599 = vmatpush1.bf16.msra.mxu0 %v544
    %600 = vmatprep.subr.bf16.mxu0 %v543
    %601 = vmatpush1.bf16.msra.mxu0 %v542
    %602 = vmatprep.subr.bf16.mxu0 %v541
    %603 = vmatpush1.bf16.msra.mxu0 %v540
    %604 = vmatprep.subr.bf16.mxu0 %v539
    %605 = vmatpush1.bf16.msra.mxu0 %v538
    %606 = vmatprep.subr.bf16.mxu0 %v537
    %607 = vmatpush1.bf16.msra.mxu0 %v536
    %608 = vmatprep.subr.bf16.mxu0 %v535
    %609 = vmatpush1.bf16.msra.mxu0 %v534
    %610 = vmatprep.subr.bf16.mxu0 %v533
    %611 = vmatpush1.bf16.msra.mxu0 %v532
    %612 = vmatprep.subr.bf16.mxu0 %v563
    %613 = vmatpush2.bf16.msra.mxu0 %v562
    %614 = vmatprep.subr.bf16.mxu0 %v561
    %615 = vmatpush2.bf16.msra.mxu0 %v560
    %616 = vmatprep.subr.bf16.mxu0 %v559
    %617 = vmatpush2.bf16.msra.mxu0 %v558
    %618 = vmatprep.subr.bf16.mxu0 %v557
    %619 = vmatpush2.bf16.msra.mxu0 %v556
    %620 = vmatprep.subr.bf16.mxu0 %v555
    %621 = vmatpush2.bf16.msra.mxu0 %v554
    %622 = vmatprep.subr.bf16.mxu0 %v553
    %623 = vmatpush2.bf16.msra.mxu0 %v552
    %624 = vmatprep.subr.bf16.mxu0 %v551
    %625 = vmatpush2.bf16.msra.mxu0 %v550
    %626 = vmatprep.subr.bf16.mxu0 %v549
    %627 = vmatpush2.bf16.msra.mxu0 %v548
    %628 = vmatprep.mubr.bf16.mxu0 %v391
    %629 = vmatmul.mubr.bf16.gmra.mxu0 %v390
    %v630 = vpop.f32.mrf.mxu0
    %v631 = vadd.f32 %v429, %v630
    %v632 = vpop.f32.mrf.mxu0
    %v633 = vadd.f32 %v433, %v632
    %v634 = vpop.f32.mrf.mxu0
    %v635 = vadd.f32 %v429, %v634
    %v636 = vpop.f32.mrf.mxu0
    %v637 = vadd.f32 %v433, %v636
    %638 = vdwg.mxu0
    %v639 = vmax.f32 %v631, 0.0
    %v640 = vmax.f32 %v633, 0.0
    %v641 = vmax.f32 %v635, 0.0
    %v642 = vmax.f32 %v637, 0.0
    %v643 = vld [vmem:[%s6] sm:$0x3]
    %v644 = vunpack.c.l.bf16 %v643
    %v646 = vlaneseq
    %v647 = vshrl.u32 %v646, 7
    %v648 = vsub.s32 0, %v647
    %v649 = vrot.slane %v644, %v648
    %v650 = vlaneseq
    %v651 = vshrl.u32 %v650, 7
    %v652 = vsub.s32 2, %v651
    %v653 = vrot.slane %v644, %v652
    %v656 = vlaneseq
    %v657 = vshrl.u32 %v656, 7
    %v658 = vsub.s32 0, %v657
    %v659 = vrot.slane %v649, %v658
    %v660 = vlaneseq
    %v661 = vshrl.u32 %v660, 7
    %v662 = vsub.s32 0, %v661
    %v663 = vrot.slane %v653, %v662
    %v664 = vmul.f32 %v639, %v659
    %v665 = vmul.f32 %v640, %v663
    %v666 = vmul.f32 %v641, %v659
    %v667 = vmul.f32 %v642, %v663
    %v668 = vadd.f32 %v664, %v665
    %669 = vadd.xlane.f32.xlu0 %v668
    %v670 = vpop.xlane.xlu0 %669
    %v671 = vadd.f32 %v666, %v667
    %672 = vadd.xlane.f32.xlu0 %v671
    %v673 = vpop.xlane.xlu0 %672
    %v674 = vld [vmem:[%s7] sm:$0x1]
    %v676 = vlaneseq
    %v677 = vshrl.u32 %v676, 7
    %v678 = vsub.s32 0, %v677
    %v679 = vrot.slane %v674, %v678
    %v681 = vadd.f32 %v670, %v679
    %v682 = vadd.f32 %v673, %v679
    %v683 = vpack.c.bf16 %v388, %v384
    %v684 = vpack.c.bf16 %v389, %v385
    %s685 = scalar_lea.vmem [#allocation4], 256
    %v686 = vld [vmem:[%s685] sm:$0xff]
    %v687 = vld [vmem:[%s685 + $0x8] sm:$0xff]
    %v688 = vld [vmem:[%s685 + $0x10] sm:$0xff]
    %v689 = vld [vmem:[%s685 + $0x18] sm:$0xff]
    %v690 = vld [vmem:[%s685 + $0x20] sm:$0xff]
    %v691 = vld [vmem:[%s685 + $0x28] sm:$0xff]
    %v692 = vld [vmem:[%s685 + $0x30] sm:$0xff]
    %v693 = vld [vmem:[%s685 + $0x38] sm:$0xff]
    %v694 = vld [vmem:[%s685 + $0x40] sm:$0xff]
    %v695 = vld [vmem:[%s685 + $0x48] sm:$0xff]
    %v696 = vld [vmem:[%s685 + $0x50] sm:$0xff]
    %v697 = vld [vmem:[%s685 + $0x58] sm:$0xff]
    %v698 = vld [vmem:[%s685 + $0x60] sm:$0xff]
    %v699 = vld [vmem:[%s685 + $0x68] sm:$0xff]
    %v700 = vld [vmem:[%s685 + $0x70] sm:$0xff]
    %v701 = vld [vmem:[%s685 + $0x78] sm:$0xff]
    %v702 = vld [vmem:[%s685 + $0x80] sm:$0xff]
    %v703 = vld [vmem:[%s685 + $0x88] sm:$0xff]
    %v704 = vld [vmem:[%s685 + $0x90] sm:$0xff]
    %v705 = vld [vmem:[%s685 + $0x98] sm:$0xff]
    %v706 = vld [vmem:[%s685 + $0xa0] sm:$0xff]
    %v707 = vld [vmem:[%s685 + $0xa8] sm:$0xff]
    %v708 = vld [vmem:[%s685 + $0xb0] sm:$0xff]
    %v709 = vld [vmem:[%s685 + $0xb8] sm:$0xff]
    %v710 = vld [vmem:[%s685 + $0xc0] sm:$0xff]
    %v711 = vld [vmem:[%s685 + $0xc8] sm:$0xff]
    %v712 = vld [vmem:[%s685 + $0xd0] sm:$0xff]
    %v713 = vld [vmem:[%s685 + $0xd8] sm:$0xff]
    %v714 = vld [vmem:[%s685 + $0xe0] sm:$0xff]
    %v715 = vld [vmem:[%s685 + $0xe8] sm:$0xff]
    %v716 = vld [vmem:[%s685 + $0xf0] sm:$0xff]
    %v717 = vld [vmem:[%s685 + $0xf8] sm:$0xff]
    %s718 = scalar_lea.vmem %s5, 2
    %v719 = vld [vmem:[%s718] sm:$0x3]
    %v721 = vlaneseq
    %v722 = vshrl.u32 %v721, 7
    %v723 = vsub.s32 0, %v722
    %v724 = vrot.slane %v719, %v723
    %v725 = vlaneseq
    %v726 = vshrl.u32 %v725, 7
    %v727 = vsub.s32 1, %v726
    %v728 = vrot.slane %v719, %v727
    %v763 = vunpack.c.l.b16 %v686
    %v764 = vunpack.c.h.b16 %v686
    %v765 = vunpack.c.l.b16 %v687
    %v766 = vunpack.c.h.b16 %v687
    %v767 = vunpack.c.l.b16 %v688
    %v768 = vunpack.c.h.b16 %v688
    %v769 = vunpack.c.l.b16 %v689
    %v770 = vunpack.c.h.b16 %v689
    %v771 = vunpack.c.l.b16 %v690
    %v772 = vunpack.c.h.b16 %v690
    %v773 = vunpack.c.l.b16 %v691
    %v774 = vunpack.c.h.b16 %v691
    %v775 = vunpack.c.l.b16 %v692
    %v776 = vunpack.c.h.b16 %v692
    %v777 = vunpack.c.l.b16 %v693
    %v778 = vunpack.c.h.b16 %v693
    %v779 = vunpack.c.l.b16 %v694
    %v780 = vunpack.c.h.b16 %v694
    %v781 = vunpack.c.l.b16 %v695
    %v782 = vunpack.c.h.b16 %v695
    %v783 = vunpack.c.l.b16 %v696
    %v784 = vunpack.c.h.b16 %v696
    %v785 = vunpack.c.l.b16 %v697
    %v786 = vunpack.c.h.b16 %v697
    %v787 = vunpack.c.l.b16 %v698
    %v788 = vunpack.c.h.b16 %v698
    %v789 = vunpack.c.l.b16 %v699
    %v790 = vunpack.c.h.b16 %v699
    %v791 = vunpack.c.l.b16 %v700
    %v792 = vunpack.c.h.b16 %v700
    %v793 = vunpack.c.l.b16 %v701
    %v794 = vunpack.c.h.b16 %v701
    %v795 = vunpack.c.l.b16 %v702
    %v796 = vunpack.c.h.b16 %v702
    %v797 = vunpack.c.l.b16 %v703
    %v798 = vunpack.c.h.b16 %v703
    %v799 = vunpack.c.l.b16 %v704
    %v800 = vunpack.c.h.b16 %v704
    %v801 = vunpack.c.l.b16 %v705
    %v802 = vunpack.c.h.b16 %v705
    %v803 = vunpack.c.l.b16 %v706
    %v804 = vunpack.c.h.b16 %v706
    %v805 = vunpack.c.l.b16 %v707
    %v806 = vunpack.c.h.b16 %v707
    %v807 = vunpack.c.l.b16 %v708
    %v808 = vunpack.c.h.b16 %v708
    %v809 = vunpack.c.l.b16 %v709
    %v810 = vunpack.c.h.b16 %v709
    %v811 = vunpack.c.l.b16 %v710
    %v812 = vunpack.c.h.b16 %v710
    %v813 = vunpack.c.l.b16 %v711
    %v814 = vunpack.c.h.b16 %v711
    %v815 = vunpack.c.l.b16 %v712
    %v816 = vunpack.c.h.b16 %v712
    %v817 = vunpack.c.l.b16 %v713
    %v818 = vunpack.c.h.b16 %v713
    %v819 = vunpack.c.l.b16 %v714
    %v820 = vunpack.c.h.b16 %v714
    %v821 = vunpack.c.l.b16 %v715
    %v822 = vunpack.c.h.b16 %v715
    %v823 = vunpack.c.l.b16 %v716
    %v824 = vunpack.c.h.b16 %v716
    %v825 = vunpack.c.l.b16 %v717
    %v826 = vunpack.c.h.b16 %v717
    %v827 = vpack.c.b16 %v765, %v763
    %v828 = vpack.c.b16 %v766, %v764
    %v829 = vpack.c.b16 %v769, %v767
    %v830 = vpack.c.b16 %v770, %v768
    %v831 = vpack.c.b16 %v773, %v771
    %v832 = vpack.c.b16 %v774, %v772
    %v833 = vpack.c.b16 %v777, %v775
    %v834 = vpack.c.b16 %v778, %v776
    %v835 = vpack.c.b16 %v781, %v779
    %v836 = vpack.c.b16 %v782, %v780
    %v837 = vpack.c.b16 %v785, %v783
    %v838 = vpack.c.b16 %v786, %v784
    %v839 = vpack.c.b16 %v789, %v787
    %v840 = vpack.c.b16 %v790, %v788
    %v841 = vpack.c.b16 %v793, %v791
    %v842 = vpack.c.b16 %v794, %v792
    %v843 = vpack.c.b16 %v797, %v795
    %v844 = vpack.c.b16 %v798, %v796
    %v845 = vpack.c.b16 %v801, %v799
    %v846 = vpack.c.b16 %v802, %v800
    %v847 = vpack.c.b16 %v805, %v803
    %v848 = vpack.c.b16 %v806, %v804
    %v849 = vpack.c.b16 %v809, %v807
    %v850 = vpack.c.b16 %v810, %v808
    %v851 = vpack.c.b16 %v813, %v811
    %v852 = vpack.c.b16 %v814, %v812
    %v853 = vpack.c.b16 %v817, %v815
    %v854 = vpack.c.b16 %v818, %v816
    %v855 = vpack.c.b16 %v821, %v819
    %v856 = vpack.c.b16 %v822, %v820
    %v857 = vpack.c.b16 %v825, %v823
    %v858 = vpack.c.b16 %v826, %v824
    %891 = vmatprep.subr.bf16.mxu0 %v842
    %892 = vmatpush1.bf16.msra.mxu0 %v841
    %893 = vmatprep.subr.bf16.mxu0 %v840
    %894 = vmatpush1.bf16.msra.mxu0 %v839
    %895 = vmatprep.subr.bf16.mxu0 %v838
    %896 = vmatpush1.bf16.msra.mxu0 %v837
    %897 = vmatprep.subr.bf16.mxu0 %v836
    %898 = vmatpush1.bf16.msra.mxu0 %v835
    %899 = vmatprep.subr.bf16.mxu0 %v834
    %900 = vmatpush1.bf16.msra.mxu0 %v833
    %901 = vmatprep.subr.bf16.mxu0 %v832
    %902 = vmatpush1.bf16.msra.mxu0 %v831
    %903 = vmatprep.subr.bf16.mxu0 %v830
    %904 = vmatpush1.bf16.msra.mxu0 %v829
    %905 = vmatprep.subr.bf16.mxu0 %v828
    %906 = vmatpush1.bf16.msra.mxu0 %v827
    %907 = vmatprep.subr.bf16.mxu0 %v858
    %908 = vmatpush2.bf16.msra.mxu0 %v857
    %909 = vmatprep.subr.bf16.mxu0 %v856
    %910 = vmatpush2.bf16.msra.mxu0 %v855
    %911 = vmatprep.subr.bf16.mxu0 %v854
    %912 = vmatpush2.bf16.msra.mxu0 %v853
    %913 = vmatprep.subr.bf16.mxu0 %v852
    %914 = vmatpush2.bf16.msra.mxu0 %v851
    %915 = vmatprep.subr.bf16.mxu0 %v850
    %916 = vmatpush2.bf16.msra.mxu0 %v849
    %917 = vmatprep.subr.bf16.mxu0 %v848
    %918 = vmatpush2.bf16.msra.mxu0 %v847
    %919 = vmatprep.subr.bf16.mxu0 %v846
    %920 = vmatpush2.bf16.msra.mxu0 %v845
    %921 = vmatprep.subr.bf16.mxu0 %v844
    %922 = vmatpush2.bf16.msra.mxu0 %v843
    %923 = vmatprep.mubr.bf16.mxu0 %v684
    %924 = vmatmul.mubr.bf16.gmra.mxu0 %v683
    %v925 = vpop.f32.mrf.mxu0
    %v926 = vadd.f32 %v724, %v925
    %v927 = vpop.f32.mrf.mxu0
    %v928 = vadd.f32 %v728, %v927
    %v929 = vpop.f32.mrf.mxu0
    %v930 = vadd.f32 %v724, %v929
    %v931 = vpop.f32.mrf.mxu0
    %v932 = vadd.f32 %v728, %v931
    %933 = vdwg.mxu0
    %v934 = vmax.f32 %v926, 0.0
    %v935 = vmax.f32 %v928, 0.0
    %v936 = vmax.f32 %v930, 0.0
    %v937 = vmax.f32 %v932, 0.0
    %s938 = scalar_lea.vmem %s6, 2
    %v939 = vld [vmem:[%s938] sm:$0x3]
    %v940 = vunpack.c.l.bf16 %v939
    %v942 = vlaneseq
    %v943 = vshrl.u32 %v942, 7
    %v944 = vsub.s32 0, %v943
    %v945 = vrot.slane %v940, %v944
    %v946 = vlaneseq
    %v947 = vshrl.u32 %v946, 7
    %v948 = vsub.s32 2, %v947
    %v949 = vrot.slane %v940, %v948
    %v952 = vlaneseq
    %v953 = vshrl.u32 %v952, 7
    %v954 = vsub.s32 0, %v953
    %v955 = vrot.slane %v945, %v954
    %v956 = vlaneseq
    %v957 = vshrl.u32 %v956, 7
    %v958 = vsub.s32 0, %v957
    %v959 = vrot.slane %v949, %v958
    %v960 = vmul.f32 %v934, %v955
    %v961 = vmul.f32 %v935, %v959
    %v962 = vmul.f32 %v936, %v955
    %v963 = vmul.f32 %v937, %v959
    %v964 = vadd.f32 %v960, %v961
    %965 = vadd.xlane.f32.xlu0 %v964
    %v966 = vpop.xlane.xlu0 %965
    %v967 = vadd.f32 %v962, %v963
    %968 = vadd.xlane.f32.xlu0 %v967
    %v969 = vpop.xlane.xlu0 %968
    %s970 = scalar_lea.vmem %s7, 1
    %v971 = vld [vmem:[%s970] sm:$0x1]
    %v973 = vlaneseq
    %v974 = vshrl.u32 %v973, 7
    %v975 = vsub.s32 0, %v974
    %v976 = vrot.slane %v971, %v975
    %v978 = vadd.f32 %v966, %v976
    %v979 = vadd.f32 %v969, %v976
    %982 = vrot.lane.b32.xlu0 %v978, 1
    %v983 = vpop.permute.xlu0 %982
    %984 = vrot.lane.b32.xlu0 %v979, 1
    %v985 = vpop.permute.xlu0 %984
    %vm988 = vcmask 7168
    %v989 = vsel %vm988, %v681, %v983
    %v990 = vsel %vm988, %v682, %v985
    %vm991 = vcmask 15360
    %992 = vst.msk [vmem:[%s8] sm:$0xff] %vm991, %v989
    %993 = vst.msk [vmem:[%s8 + $0x8] sm:$0xff] %vm991, %v990
    // Predicated region
    $region42: #{tpu_custom_call.1} parent=1 // pred_check
      _
    $region43: #{tpu_custom_call.1} parent=1 // pred_check_branch
      %995 = sbr.rel (0) target = $region45
    $region44: #{tpu_custom_call.1} parent=1 // pred_region
      _
    $region45: #{tpu_custom_call.1} parent=1 // pred_fallthru
      _
    // Predicated region
    $region46: #{tpu_custom_call.1} parent=1 // pred_check
      _
    $region47: #{tpu_custom_call.1} parent=1 // pred_check_branch
      %997 = sbr.rel (0) target = $region49
    $region48: #{tpu_custom_call.1} parent=1 // pred_region
      _
    $region49: #{tpu_custom_call.1} parent=1 // pred_fallthru
      _
    %998 = vsyncpa [#allocation3], 1
    %999 = vsyncpa [#allocation5], 1

// kernel: tpu_custom_call.1
$region0: #{tpu_custom_call.1}
  #allocation0 [shape = 'u32[]', space=smem, size = 0x4, offset = 0x4, fixed_abs, tag = 'smem constant byte address 0x4 - core index']
  #allocation1 [shape = 'u32[144,128]{1,0:T(1,128)}', space=vmem, size = 0x12000, scoped, tag = 'internal scratch']
  %s0 = inlined_call_operand.vmem [shape: bf16[16,32], index: 0, kind: input, shape index: {}]
  %s1 = inlined_call_operand.vmem [shape: bf16[16,4], index: 1, kind: input, shape index: {}]
  %s2 = inlined_call_operand.hbm [shape: bf16[128,512], index: 2, kind: input, shape index: {}]
  %s3 = inlined_call_operand.vmem [shape: f32[1,512], index: 3, kind: input, shape index: {}]
  %s4 = inlined_call_operand.hbm [shape: bf16[2,256,256], index: 4, kind: input, shape index: {}]
  %s5 = inlined_call_operand.vmem [shape: f32[2,1,256], index: 5, kind: input, shape index: {}]
  %s6 = inlined_call_operand.vmem [shape: bf16[2,1,256], index: 6, kind: input, shape index: {}]
  %s7 = inlined_call_operand.vmem [shape: f32[2,1,1], index: 7, kind: input, shape index: {}]
  %s8 = inlined_call_operand.vmem [shape: f32[16,2], index: 8, kind: output, shape index: {}]
  %s9 = sld [smem:[#allocation0]]
  $region50: #{tpu_custom_call.1} parent=0
    _
  %s11 = ssub.s32 1, %s9
  %s12 = scalar_select 0, %s11, %s9
  $region1: #{tpu_custom_call.1} parent=0
    #allocation2 [shape = 'u8[131072]{0}', space=vmem, size = 0x20000, scoped, tag = 'input window, operand 2, single buffered']
    #allocation3 [shape = 's32[1]{0}', space=sflag, size = 0x4, scoped, tag = 'scoped memory for tpu_custom_call.1']
    #allocation4 [shape = 'u8[262144]{0}', space=vmem, size = 0x40000, scoped, tag = 'input window, operand 4, single buffered']
    #allocation5 [shape = 's32[1]{0}', space=sflag, size = 0x4, scoped, tag = 'scoped memory for tpu_custom_call.1']
    %13 = vsyncpa [#allocation3], 0
    %14 = vsyncpa [#allocation5], 0
    // Predicated region
    $region2: #{tpu_custom_call.1} parent=1 // pred_check
      _
    $region3: #{tpu_custom_call.1} parent=1 // pred_check_branch
      %16 = sbr.rel (0) target = $region5
    $region4: #{tpu_custom_call.1} parent=1 // pred_region
      _
    $region5: #{tpu_custom_call.1} parent=1 // pred_fallthru
      _
    // Predicated region
    $region6: #{tpu_custom_call.1} parent=1 // pred_check
      _
    $region7: #{tpu_custom_call.1} parent=1 // pred_check_branch
      %18 = sbr.rel (0) target = $region9
    $region8: #{tpu_custom_call.1} parent=1 // pred_region
      _
    $region9: #{tpu_custom_call.1} parent=1 // pred_fallthru
      _
    // Predicated region
    $region10: #{tpu_custom_call.1} parent=1 // pred_check
      _
    $region11: #{tpu_custom_call.1} parent=1 // pred_check_branch
      %20 = sbr.rel (0) target = $region13
    $region12: #{tpu_custom_call.1} parent=1 // pred_region
      %s22 = ssub.s32 4096, 4096
      %23 = vsyncadd [#allocation3], %s22
      %s24 = sshll.u32 [#allocation2], 4
      %s25 = int_to_ptr.vmem [resolvable:$true] %s24
      %30 = dma.hbm_to_vmem [thread:$0]  %s2, 4096, %s25, [#allocation3], 256, 256, 16
    $region13: #{tpu_custom_call.1} parent=1 // pred_fallthru
      _
    // Predicated region
    $region14: #{tpu_custom_call.1} parent=1 // pred_check
      _
    $region15: #{tpu_custom_call.1} parent=1 // pred_check_branch
      %32 = sbr.rel (0) target = $region17
    $region16: #{tpu_custom_call.1} parent=1 // pred_region
      _
    $region17: #{tpu_custom_call.1} parent=1 // pred_fallthru
      _
    // Predicated region
    $region18: #{tpu_custom_call.1} parent=1 // pred_check
      _
    $region19: #{tpu_custom_call.1} parent=1 // pred_check_branch
      %34 = sbr.rel (0) target = $region21
    $region20: #{tpu_custom_call.1} parent=1 // pred_region
      %s36 = ssub.s32 8192, 8192
      %37 = vsyncadd [#allocation5], %s36
      %s38 = sshll.u32 [#allocation4], 4
      %s39 = int_to_ptr.vmem [resolvable:$true] %s38
      %44 = dma.hbm_to_vmem [thread:$0]  %s4, 8192, %s39, [#allocation5], 128, 128, 8
    $region21: #{tpu_custom_call.1} parent=1 // pred_fallthru
      _
    // Predicated region
    $region22: #{tpu_custom_call.1} parent=1 // pred_check
      _
    $region23: #{tpu_custom_call.1} parent=1 // pred_check_branch
      %46 = sbr.rel (0) target = $region25
    $region24: #{tpu_custom_call.1} parent=1 // pred_region
      _
    $region25: #{tpu_custom_call.1} parent=1 // pred_fallthru
      _
    // Predicated region
    $region26: #{tpu_custom_call.1} parent=1 // pred_check
      _
    $region27: #{tpu_custom_call.1} parent=1 // pred_check_branch
      %48 = sbr.rel (0) target = $region29
    $region28: #{tpu_custom_call.1} parent=1 // pred_region
      _
    $region29: #{tpu_custom_call.1} parent=1 // pred_fallthru
      _
    // Predicated region
    $region30: #{tpu_custom_call.1} parent=1 // pred_check
      _
    $region31: #{tpu_custom_call.1} parent=1 // pred_check_branch
      %50 = sbr.rel (0) target = $region33
    $region32: #{tpu_custom_call.1} parent=1 // pred_region
      _
    $region33: #{tpu_custom_call.1} parent=1 // pred_fallthru
      _
    // Predicated region
    $region34: #{tpu_custom_call.1} parent=1 // pred_check
      _
    $region35: #{tpu_custom_call.1} parent=1 // pred_check_branch
      %52 = sbr.rel (0) target = $region37
    $region36: #{tpu_custom_call.1} parent=1 // pred_region
      %53 = dma.done [#allocation3], 4096
    $region37: #{tpu_custom_call.1} parent=1 // pred_fallthru
      _
    // Predicated region
    $region38: #{tpu_custom_call.1} parent=1 // pred_check
      _
    $region39: #{tpu_custom_call.1} parent=1 // pred_check_branch
      %55 = sbr.rel (0) target = $region41
    $region40: #{tpu_custom_call.1} parent=1 // pred_region
      %56 = dma.done [#allocation5], 8192
    $region41: #{tpu_custom_call.1} parent=1 // pred_fallthru
      _
    %v58 = vld [vmem:[%s0] sm:$0xf]
    %v59 = vld [vmem:[%s0 + $0x4] sm:$0xf]
    %v60 = vld [vmem:[%s1] sm:$0xf]
    %v61 = vld [vmem:[%s1 + $0x4] sm:$0xf]
    %v64 = vunpack.c.l.b16 %v58
    %v65 = vunpack.c.l.b16 %v59
    %v66 = vpack.c.b16 %v65, %v64
    %v69 = vunpack.c.l.b16 %v60
    %v70 = vunpack.c.l.b16 %v61
    %v71 = vpack.c.b16 %v70, %v69
    %72 = vrot.lane.b32.xlu0 %v71, 32
    %v73 = vpop.permute.xlu0 %72
    %vm74 = vcmask 261120
    %v77 = vsel %vm74, %v66, %v73
    %vm78 = vcmask 293888
    %v80 = vsel %vm78, %v77, 0
    %v82 = vld [vmem:[#allocation2] sm:$0xff]
    %v83 = vld [vmem:[#allocation2 + $0x8] sm:$0xff]
    %v84 = vld [vmem:[#allocation2 + $0x10] sm:$0xff]
    %v85 = vld [vmem:[#allocation2 + $0x18] sm:$0xff]
    %v86 = vld [vmem:[#allocation2 + $0x20] sm:$0xff]
    %v87 = vld [vmem:[#allocation2 + $0x28] sm:$0xff]
    %v88 = vld [vmem:[#allocation2 + $0x30] sm:$0xff]
    %v89 = vld [vmem:[#allocation2 + $0x38] sm:$0xff]
    %v90 = vld [vmem:[#allocation2 + $0x40] sm:$0xff]
    %v91 = vld [vmem:[#allocation2 + $0x48] sm:$0xff]
    %v92 = vld [vmem:[#allocation2 + $0x50] sm:$0xff]
    %v93 = vld [vmem:[#allocation2 + $0x58] sm:$0xff]
    %v94 = vld [vmem:[#allocation2 + $0x60] sm:$0xff]
    %v95 = vld [vmem:[#allocation2 + $0x68] sm:$0xff]
    %v96 = vld [vmem:[#allocation2 + $0x70] sm:$0xff]
    %v97 = vld [vmem:[#allocation2 + $0x78] sm:$0xff]
    %v98 = vld [vmem:[#allocation2 + $0x80] sm:$0xff]
    %v99 = vld [vmem:[#allocation2 + $0x88] sm:$0xff]
    %v100 = vld [vmem:[#allocation2 + $0x90] sm:$0xff]
    %v101 = vld [vmem:[#allocation2 + $0x98] sm:$0xff]
    %v102 = vld [vmem:[#allocation2 + $0xa0] sm:$0xff]
    %v103 = vld [vmem:[#allocation2 + $0xa8] sm:$0xff]
    %v104 = vld [vmem:[#allocation2 + $0xb0] sm:$0xff]
    %v105 = vld [vmem:[#allocation2 + $0xb8] sm:$0xff]
    %v106 = vld [vmem:[#allocation2 + $0xc0] sm:$0xff]
    %v107 = vld [vmem:[#allocation2 + $0xc8] sm:$0xff]
    %v108 = vld [vmem:[#allocation2 + $0xd0] sm:$0xff]
    %v109 = vld [vmem:[#allocation2 + $0xd8] sm:$0xff]
    %v110 = vld [vmem:[#allocation2 + $0xe0] sm:$0xff]
    %v111 = vld [vmem:[#allocation2 + $0xe8] sm:$0xff]
    %v112 = vld [vmem:[#allocation2 + $0xf0] sm:$0xff]
    %v113 = vld [vmem:[#allocation2 + $0xf8] sm:$0xff]
    %v114 = vld [vmem:[%s3] sm:$0xf]
    %v116 = vlaneseq
    %v117 = vshrl.u32 %v116, 7
    %v118 = vsub.s32 0, %v117
    %v119 = vrot.slane %v114, %v118
    %v120 = vlaneseq
    %v121 = vshrl.u32 %v120, 7
    %v122 = vsub.s32 1, %v121
    %v123 = vrot.slane %v114, %v122
    %v124 = vlaneseq
    %v125 = vshrl.u32 %v124, 7
    %v126 = vsub.s32 2, %v125
    %v127 = vrot.slane %v114, %v126
    %v128 = vlaneseq
    %v129 = vshrl.u32 %v128, 7
    %v130 = vsub.s32 3, %v129
    %v131 = vrot.slane %v114, %v130
    %v168 = vunpack.c.l.b16 %v82
    %v169 = vunpack.c.h.b16 %v82
    %v170 = vunpack.c.l.b16 %v83
    %v171 = vunpack.c.h.b16 %v83
    %v172 = vunpack.c.l.b16 %v84
    %v173 = vunpack.c.h.b16 %v84
    %v174 = vunpack.c.l.b16 %v85
    %v175 = vunpack.c.h.b16 %v85
    %v176 = vunpack.c.l.b16 %v86
    %v177 = vunpack.c.h.b16 %v86
    %v178 = vunpack.c.l.b16 %v87
    %v179 = vunpack.c.h.b16 %v87
    %v180 = vunpack.c.l.b16 %v88
    %v181 = vunpack.c.h.b16 %v88
    %v182 = vunpack.c.l.b16 %v89
    %v183 = vunpack.c.h.b16 %v89
    %v184 = vunpack.c.l.b16 %v90
    %v185 = vunpack.c.h.b16 %v90
    %v186 = vunpack.c.l.b16 %v91
    %v187 = vunpack.c.h.b16 %v91
    %v188 = vunpack.c.l.b16 %v92
    %v189 = vunpack.c.h.b16 %v92
    %v190 = vunpack.c.l.b16 %v93
    %v191 = vunpack.c.h.b16 %v93
    %v192 = vunpack.c.l.b16 %v94
    %v193 = vunpack.c.h.b16 %v94
    %v194 = vunpack.c.l.b16 %v95
    %v195 = vunpack.c.h.b16 %v95
    %v196 = vunpack.c.l.b16 %v96
    %v197 = vunpack.c.h.b16 %v96
    %v198 = vunpack.c.l.b16 %v97
    %v199 = vunpack.c.h.b16 %v97
    %v200 = vunpack.c.l.b16 %v98
    %v201 = vunpack.c.h.b16 %v98
    %v202 = vunpack.c.l.b16 %v99
    %v203 = vunpack.c.h.b16 %v99
    %v204 = vunpack.c.l.b16 %v100
    %v205 = vunpack.c.h.b16 %v100
    %v206 = vunpack.c.l.b16 %v101
    %v207 = vunpack.c.h.b16 %v101
    %v208 = vunpack.c.l.b16 %v102
    %v209 = vunpack.c.h.b16 %v102
    %v210 = vunpack.c.l.b16 %v103
    %v211 = vunpack.c.h.b16 %v103
    %v212 = vunpack.c.l.b16 %v104
    %v213 = vunpack.c.h.b16 %v104
    %v214 = vunpack.c.l.b16 %v105
    %v215 = vunpack.c.h.b16 %v105
    %v216 = vunpack.c.l.b16 %v106
    %v217 = vunpack.c.h.b16 %v106
    %v218 = vunpack.c.l.b16 %v107
    %v219 = vunpack.c.h.b16 %v107
    %v220 = vunpack.c.l.b16 %v108
    %v221 = vunpack.c.h.b16 %v108
    %v222 = vunpack.c.l.b16 %v109
    %v223 = vunpack.c.h.b16 %v109
    %v224 = vunpack.c.l.b16 %v110
    %v225 = vunpack.c.h.b16 %v110
    %v226 = vunpack.c.l.b16 %v111
    %v227 = vunpack.c.h.b16 %v111
    %v228 = vunpack.c.l.b16 %v112
    %v229 = vunpack.c.h.b16 %v112
    %v230 = vunpack.c.l.b16 %v113
    %v231 = vunpack.c.h.b16 %v113
    %v232 = vpack.c.b16 %v172, %v168
    %v233 = vpack.c.b16 %v173, %v169
    %v234 = vpack.c.b16 %v174, %v170
    %v235 = vpack.c.b16 %v175, %v171
    %v236 = vpack.c.b16 %v180, %v176
    %v237 = vpack.c.b16 %v181, %v177
    %v238 = vpack.c.b16 %v182, %v178
    %v239 = vpack.c.b16 %v183, %v179
    %v240 = vpack.c.b16 %v188, %v184
    %v241 = vpack.c.b16 %v189, %v185
    %v242 = vpack.c.b16 %v190, %v186
    %v243 = vpack.c.b16 %v191, %v187
    %v244 = vpack.c.b16 %v196, %v192
    %v245 = vpack.c.b16 %v197, %v193
    %v246 = vpack.c.b16 %v198, %v194
    %v247 = vpack.c.b16 %v199, %v195
    %v248 = vpack.c.b16 %v204, %v200
    %v249 = vpack.c.b16 %v205, %v201
    %v250 = vpack.c.b16 %v206, %v202
    %v251 = vpack.c.b16 %v207, %v203
    %v252 = vpack.c.b16 %v212, %v208
    %v253 = vpack.c.b16 %v213, %v209
    %v254 = vpack.c.b16 %v214, %v210
    %v255 = vpack.c.b16 %v215, %v211
    %v256 = vpack.c.b16 %v220, %v216
    %v257 = vpack.c.b16 %v221, %v217
    %v258 = vpack.c.b16 %v222, %v218
    %v259 = vpack.c.b16 %v223, %v219
    %v260 = vpack.c.b16 %v228, %v224
    %v261 = vpack.c.b16 %v229, %v225
    %v262 = vpack.c.b16 %v230, %v226
    %v263 = vpack.c.b16 %v231, %v227
    %296 = vmatprep.subr.bf16.mxu0 %v261
    %297 = vmatpush1.bf16.msra.mxu0 %v260
    %298 = vmatprep.subr.bf16.mxu0 %v257
    %299 = vmatpush1.bf16.msra.mxu0 %v256
    %300 = vmatprep.subr.bf16.mxu0 %v253
    %301 = vmatpush1.bf16.msra.mxu0 %v252
    %302 = vmatprep.subr.bf16.mxu0 %v249
    %303 = vmatpush1.bf16.msra.mxu0 %v248
    %304 = vmatprep.subr.bf16.mxu0 %v245
    %305 = vmatpush1.bf16.msra.mxu0 %v244
    %306 = vmatprep.subr.bf16.mxu0 %v241
    %307 = vmatpush1.bf16.msra.mxu0 %v240
    %308 = vmatprep.subr.bf16.mxu0 %v237
    %309 = vmatpush1.bf16.msra.mxu0 %v236
    %310 = vmatprep.subr.bf16.mxu0 %v233
    %311 = vmatpush1.bf16.msra.mxu0 %v232
    %312 = vmatprep.subr.bf16.mxu0 0
    %313 = vmatpush2.bf16.msra.mxu0 0
    %314 = vmatprep.subr.bf16.mxu0 0
    %315 = vmatpush2.bf16.msra.mxu0 0
    %316 = vmatprep.subr.bf16.mxu0 0
    %317 = vmatpush2.bf16.msra.mxu0 0
    %318 = vmatprep.subr.bf16.mxu0 0
    %319 = vmatpush2.bf16.msra.mxu0 0
    %320 = vmatprep.subr.bf16.mxu0 0
    %321 = vmatpush2.bf16.msra.mxu0 0
    %322 = vmatprep.subr.bf16.mxu0 0
    %323 = vmatpush2.bf16.msra.mxu0 0
    %324 = vmatprep.subr.bf16.mxu0 0
    %325 = vmatpush2.bf16.msra.mxu0 0
    %326 = vmatprep.subr.bf16.mxu0 0
    %327 = vmatpush2.bf16.msra.mxu0 0
    %328 = vmatprep.mubr.bf16.mxu0 0
    %329 = vmatmul.mubr.bf16.gmra.mxu0 %v80
    %v330 = vpop.f32.mrf.mxu0
    %v331 = vadd.f32 %v119, %v330
    %v332 = vpop.f32.mrf.mxu0
    %v333 = vadd.f32 %v123, %v332
    %v334 = vpop.f32.mrf.mxu0
    %v335 = vadd.f32 %v119, %v334
    %v336 = vpop.f32.mrf.mxu0
    %v337 = vadd.f32 %v123, %v336
    %338 = vdwg.mxu0
    %339 = vmatprep.subr.bf16.mxu0 %v263
    %340 = vmatpush1.bf16.msra.mxu0 %v262
    %341 = vmatprep.subr.bf16.mxu0 %v259
    %342 = vmatpush1.bf16.msra.mxu0 %v258
    %343 = vmatprep.subr.bf16.mxu0 %v255
    %344 = vmatpush1.bf16.msra.mxu0 %v254
    %345 = vmatprep.subr.bf16.mxu0 %v251
    %346 = vmatpush1.bf16.msra.mxu0 %v250
    %347 = vmatprep.subr.bf16.mxu0 %v247
    %348 = vmatpush1.bf16.msra.mxu0 %v246
    %349 = vmatprep.subr.bf16.mxu0 %v243
    %350 = vmatpush1.bf16.msra.mxu0 %v242
    %351 = vmatprep.subr.bf16.mxu0 %v239
    %352 = vmatpush1.bf16.msra.mxu0 %v238
    %353 = vmatprep.subr.bf16.mxu0 %v235
    %354 = vmatpush1.bf16.msra.mxu0 %v234
    %355 = vmatprep.subr.bf16.mxu0 0
    %356 = vmatpush2.bf16.msra.mxu0 0
    %357 = vmatprep.subr.bf16.mxu0 0
    %358 = vmatpush2.bf16.msra.mxu0 0
    %359 = vmatprep.subr.bf16.mxu0 0
    %360 = vmatpush2.bf16.msra.mxu0 0
    %361 = vmatprep.subr.bf16.mxu0 0
    %362 = vmatpush2.bf16.msra.mxu0 0
    %363 = vmatprep.subr.bf16.mxu0 0
    %364 = vmatpush2.bf16.msra.mxu0 0
    %365 = vmatprep.subr.bf16.mxu0 0
    %366 = vmatpush2.bf16.msra.mxu0 0
    %367 = vmatprep.subr.bf16.mxu0 0
    %368 = vmatpush2.bf16.msra.mxu0 0
    %369 = vmatprep.subr.bf16.mxu0 0
    %370 = vmatpush2.bf16.msra.mxu0 0
    %371 = vmatprep.mubr.bf16.mxu0 0
    %372 = vmatmul.mubr.bf16.gmra.mxu0 %v80
    %v373 = vpop.f32.mrf.mxu0
    %v374 = vadd.f32 %v127, %v373
    %v375 = vpop.f32.mrf.mxu0
    %v376 = vadd.f32 %v131, %v375
    %v377 = vpop.f32.mrf.mxu0
    %v378 = vadd.f32 %v127, %v377
    %v379 = vpop.f32.mrf.mxu0
    %v380 = vadd.f32 %v131, %v379
    %381 = vdwg.mxu0
    %v382 = vmax.f32 %v331, 0.0
    %v383 = vmax.f32 %v333, 0.0
    %v384 = vmax.f32 %v374, 0.0
    %v385 = vmax.f32 %v376, 0.0
    %v386 = vmax.f32 %v335, 0.0
    %v387 = vmax.f32 %v337, 0.0
    %v388 = vmax.f32 %v378, 0.0
    %v389 = vmax.f32 %v380, 0.0
    %v390 = vpack.c.bf16 %v386, %v382
    %v391 = vpack.c.bf16 %v387, %v383
    %v392 = vld [vmem:[#allocation4] sm:$0xff]
    %v393 = vld [vmem:[#allocation4 + $0x8] sm:$0xff]
    %v394 = vld [vmem:[#allocation4 + $0x10] sm:$0xff]
    %v395 = vld [vmem:[#allocation4 + $0x18] sm:$0xff]
    %v396 = vld [vmem:[#allocation4 + $0x20] sm:$0xff]
    %v397 = vld [vmem:[#allocation4 + $0x28] sm:$0xff]
    %v398 = vld [vmem:[#allocation4 + $0x30] sm:$0xff]
    %v399 = vld [vmem:[#allocation4 + $0x38] sm:$0xff]
    %v400 = vld [vmem:[#allocation4 + $0x40] sm:$0xff]
    %v401 = vld [vmem:[#allocation4 + $0x48] sm:$0xff]
    %v402 = vld [vmem:[#allocation4 + $0x50] sm:$0xff]
    %v403 = vld [vmem:[#allocation4 + $0x58] sm:$0xff]
    %v404 = vld [vmem:[#allocation4 + $0x60] sm:$0xff]
    %v405 = vld [vmem:[#allocation4 + $0x68] sm:$0xff]
    %v406 = vld [vmem:[#allocation4 + $0x70] sm:$0xff]
    %v407 = vld [vmem:[#allocation4 + $0x78] sm:$0xff]
    %v408 = vld [vmem:[#allocation4 + $0x80] sm:$0xff]
    %v409 = vld [vmem:[#allocation4 + $0x88] sm:$0xff]
    %v410 = vld [vmem:[#allocation4 + $0x90] sm:$0xff]
    %v411 = vld [vmem:[#allocation4 + $0x98] sm:$0xff]
    %v412 = vld [vmem:[#allocation4 + $0xa0] sm:$0xff]
    %v413 = vld [vmem:[#allocation4 + $0xa8] sm:$0xff]
    %v414 = vld [vmem:[#allocation4 + $0xb0] sm:$0xff]
    %v415 = vld [vmem:[#allocation4 + $0xb8] sm:$0xff]
    %v416 = vld [vmem:[#allocation4 + $0xc0] sm:$0xff]
    %v417 = vld [vmem:[#allocation4 + $0xc8] sm:$0xff]
    %v418 = vld [vmem:[#allocation4 + $0xd0] sm:$0xff]
    %v419 = vld [vmem:[#allocation4 + $0xd8] sm:$0xff]
    %v420 = vld [vmem:[#allocation4 + $0xe0] sm:$0xff]
    %v421 = vld [vmem:[#allocation4 + $0xe8] sm:$0xff]
    %v422 = vld [vmem:[#allocation4 + $0xf0] sm:$0xff]
    %v423 = vld [vmem:[#allocation4 + $0xf8] sm:$0xff]
    %v424 = vld [vmem:[%s5] sm:$0x3]
    %v426 = vlaneseq
    %v427 = vshrl.u32 %v426, 7
    %v428 = vsub.s32 0, %v427
    %v429 = vrot.slane %v424, %v428
    %v430 = vlaneseq
    %v431 = vshrl.u32 %v430, 7
    %v432 = vsub.s32 1, %v431
    %v433 = vrot.slane %v424, %v432
    %v468 = vunpack.c.l.b16 %v392
    %v469 = vunpack.c.h.b16 %v392
    %v470 = vunpack.c.l.b16 %v393
    %v471 = vunpack.c.h.b16 %v393
    %v472 = vunpack.c.l.b16 %v394
    %v473 = vunpack.c.h.b16 %v394
    %v474 = vunpack.c.l.b16 %v395
    %v475 = vunpack.c.h.b16 %v395
    %v476 = vunpack.c.l.b16 %v396
    %v477 = vunpack.c.h.b16 %v396
    %v478 = vunpack.c.l.b16 %v397
    %v479 = vunpack.c.h.b16 %v397
    %v480 = vunpack.c.l.b16 %v398
    %v481 = vunpack.c.h.b16 %v398
    %v482 = vunpack.c.l.b16 %v399
    %v483 = vunpack.c.h.b16 %v399
    %v484 = vunpack.c.l.b16 %v400
    %v485 = vunpack.c.h.b16 %v400
    %v486 = vunpack.c.l.b16 %v401
    %v487 = vunpack.c.h.b16 %v401
    %v488 = vunpack.c.l.b16 %v402
    %v489 = vunpack.c.h.b16 %v402
    %v490 = vunpack.c.l.b16 %v403
    %v491 = vunpack.c.h.b16 %v403
    %v492 = vunpack.c.l.b16 %v404
    %v493 = vunpack.c.h.b16 %v404
    %v494 = vunpack.c.l.b16 %v405
    %v495 = vunpack.c.h.b16 %v405
    %v496 = vunpack.c.l.b16 %v406
    %v497 = vunpack.c.h.b16 %v406
    %v498 = vunpack.c.l.b16 %v407
    %v499 = vunpack.c.h.b16 %v407
    %v500 = vunpack.c.l.b16 %v408
    %v501 = vunpack.c.h.b16 %v408
    %v502 = vunpack.c.l.b16 %v409
    %v503 = vunpack.c.h.b16 %v409
    %v504 = vunpack.c.l.b16 %v410
    %v505 = vunpack.c.h.b16 %v410
    %v506 = vunpack.c.l.b16 %v411
    %v507 = vunpack.c.h.b16 %v411
    %v508 = vunpack.c.l.b16 %v412
    %v509 = vunpack.c.h.b16 %v412
    %v510 = vunpack.c.l.b16 %v413
    %v511 = vunpack.c.h.b16 %v413
    %v512 = vunpack.c.l.b16 %v414
    %v513 = vunpack.c.h.b16 %v414
    %v514 = vunpack.c.l.b16 %v415
    %v515 = vunpack.c.h.b16 %v415
    %v516 = vunpack.c.l.b16 %v416
    %v517 = vunpack.c.h.b16 %v416
    %v518 = vunpack.c.l.b16 %v417
    %v519 = vunpack.c.h.b16 %v417
    %v520 = vunpack.c.l.b16 %v418
    %v521 = vunpack.c.h.b16 %v418
    %v522 = vunpack.c.l.b16 %v419
    %v523 = vunpack.c.h.b16 %v419
    %v524 = vunpack.c.l.b16 %v420
    %v525 = vunpack.c.h.b16 %v420
    %v526 = vunpack.c.l.b16 %v421
    %v527 = vunpack.c.h.b16 %v421
    %v528 = vunpack.c.l.b16 %v422
    %v529 = vunpack.c.h.b16 %v422
    %v530 = vunpack.c.l.b16 %v423
    %v531 = vunpack.c.h.b16 %v423
    %v532 = vpack.c.b16 %v470, %v468
    %v533 = vpack.c.b16 %v471, %v469
    %v534 = vpack.c.b16 %v474, %v472
    %v535 = vpack.c.b16 %v475, %v473
    %v536 = vpack.c.b16 %v478, %v476
    %v537 = vpack.c.b16 %v479, %v477
    %v538 = vpack.c.b16 %v482, %v480
    %v539 = vpack.c.b16 %v483, %v481
    %v540 = vpack.c.b16 %v486, %v484
    %v541 = vpack.c.b16 %v487, %v485
    %v542 = vpack.c.b16 %v490, %v488
    %v543 = vpack.c.b16 %v491, %v489
    %v544 = vpack.c.b16 %v494, %v492
    %v545 = vpack.c.b16 %v495, %v493
    %v546 = vpack.c.b16 %v498, %v496
    %v547 = vpack.c.b16 %v499, %v497
    %v548 = vpack.c.b16 %v502, %v500
    %v549 = vpack.c.b16 %v503, %v501
    %v550 = vpack.c.b16 %v506, %v504
    %v551 = vpack.c.b16 %v507, %v505
    %v552 = vpack.c.b16 %v510, %v508
    %v553 = vpack.c.b16 %v511, %v509
    %v554 = vpack.c.b16 %v514, %v512
    %v555 = vpack.c.b16 %v515, %v513
    %v556 = vpack.c.b16 %v518, %v516
    %v557 = vpack.c.b16 %v519, %v517
    %v558 = vpack.c.b16 %v522, %v520
    %v559 = vpack.c.b16 %v523, %v521
    %v560 = vpack.c.b16 %v526, %v524
    %v561 = vpack.c.b16 %v527, %v525
    %v562 = vpack.c.b16 %v530, %v528
    %v563 = vpack.c.b16 %v531, %v529
    %596 = vmatprep.subr.bf16.mxu0 %v547
    %597 = vmatpush1.bf16.msra.mxu0 %v546
    %598 = vmatprep.subr.bf16.mxu0 %v545
    %599 = vmatpush1.bf16.msra.mxu0 %v544
    %600 = vmatprep.subr.bf16.mxu0 %v543
    %601 = vmatpush1.bf16.msra.mxu0 %v542
    %602 = vmatprep.subr.bf16.mxu0 %v541
    %603 = vmatpush1.bf16.msra.mxu0 %v540
    %604 = vmatprep.subr.bf16.mxu0 %v539
    %605 = vmatpush1.bf16.msra.mxu0 %v538
    %606 = vmatprep.subr.bf16.mxu0 %v537
    %607 = vmatpush1.bf16.msra.mxu0 %v536
    %608 = vmatprep.subr.bf16.mxu0 %v535
    %609 = vmatpush1.bf16.msra.mxu0 %v534
    %610 = vmatprep.subr.bf16.mxu0 %v533
    %611 = vmatpush1.bf16.msra.mxu0 %v532
    %612 = vmatprep.subr.bf16.mxu0 %v563
    %613 = vmatpush2.bf16.msra.mxu0 %v562
    %614 = vmatprep.subr.bf16.mxu0 %v561
    %615 = vmatpush2.bf16.msra.mxu0 %v560
    %616 = vmatprep.subr.bf16.mxu0 %v559
    %617 = vmatpush2.bf16.msra.mxu0 %v558
    %618 = vmatprep.subr.bf16.mxu0 %v557
    %619 = vmatpush2.bf16.msra.mxu0 %v556
    %620 = vmatprep.subr.bf16.mxu0 %v555
    %621 = vmatpush2.bf16.msra.mxu0 %v554
    %622 = vmatprep.subr.bf16.mxu0 %v553
    %623 = vmatpush2.bf16.msra.mxu0 %v552
    %624 = vmatprep.subr.bf16.mxu0 %v551
    %625 = vmatpush2.bf16.msra.mxu0 %v550
    %626 = vmatprep.subr.bf16.mxu0 %v549
    %627 = vmatpush2.bf16.msra.mxu0 %v548
    %628 = vmatprep.mubr.bf16.mxu0 %v391
    %629 = vmatmul.mubr.bf16.gmra.mxu0 %v390
    %v630 = vpop.f32.mrf.mxu0
    %v631 = vadd.f32 %v429, %v630
    %v632 = vpop.f32.mrf.mxu0
    %v633 = vadd.f32 %v433, %v632
    %v634 = vpop.f32.mrf.mxu0
    %v635 = vadd.f32 %v429, %v634
    %v636 = vpop.f32.mrf.mxu0
    %v637 = vadd.f32 %v433, %v636
    %638 = vdwg.mxu0
    %v639 = vmax.f32 %v631, 0.0
    %v640 = vmax.f32 %v633, 0.0
    %v641 = vmax.f32 %v635, 0.0
    %v642 = vmax.f32 %v637, 0.0
    %v643 = vld [vmem:[%s6] sm:$0x3]
    %v644 = vunpack.c.l.bf16 %v643
    %v646 = vlaneseq
    %v647 = vshrl.u32 %v646, 7
    %v648 = vsub.s32 0, %v647
    %v649 = vrot.slane %v644, %v648
    %v650 = vlaneseq
    %v651 = vshrl.u32 %v650, 7
    %v652 = vsub.s32 2, %v651
    %v653 = vrot.slane %v644, %v652
    %v656 = vlaneseq
    %v657 = vshrl.u32 %v656, 7
    %v658 = vsub.s32 0, %v657
    %v659 = vrot.slane %v649, %v658
    %v660 = vlaneseq
    %v661 = vshrl.u32 %v660, 7
    %v662 = vsub.s32 0, %v661
    %v663 = vrot.slane %v653, %v662
    %v664 = vmul.f32 %v639, %v659
    %v665 = vmul.f32 %v640, %v663
    %v666 = vmul.f32 %v641, %v659
    %v667 = vmul.f32 %v642, %v663
    %v668 = vadd.f32 %v664, %v665
    %669 = vadd.xlane.f32.xlu0 %v668
    %v670 = vpop.xlane.xlu0 %669
    %v671 = vadd.f32 %v666, %v667
    %672 = vadd.xlane.f32.xlu0 %v671
    %v673 = vpop.xlane.xlu0 %672
    %v674 = vld [vmem:[%s7] sm:$0x1]
    %v676 = vlaneseq
    %v677 = vshrl.u32 %v676, 7
    %v678 = vsub.s32 0, %v677
    %v679 = vrot.slane %v674, %v678
    %v681 = vadd.f32 %v670, %v679
    %v682 = vadd.f32 %v673, %v679
    %v683 = vpack.c.bf16 %v388, %v384
    %v684 = vpack.c.bf16 %v389, %v385
    %s685 = scalar_lea.vmem [#allocation4], 256
    %v686 = vld [vmem:[%s685] sm:$0xff]
    %v687 = vld [vmem:[%s685 + $0x8] sm:$0xff]
    %v688 = vld [vmem:[%s685 + $0x10] sm:$0xff]
    %v689 = vld [vmem:[%s685 + $0x18] sm:$0xff]
    %v690 = vld [vmem:[%s685 + $0x20] sm:$0xff]
    %v691 = vld [vmem:[%s685 + $0x28] sm:$0xff]
    %v692 = vld [vmem:[%s685 + $0x30] sm:$0xff]
    %v693 = vld [vmem:[%s685 + $0x38] sm:$0xff]
    %v694 = vld [vmem:[%s685 + $0x40] sm:$0xff]
    %v695 = vld [vmem:[%s685 + $0x48] sm:$0xff]
    %v696 = vld [vmem:[%s685 + $0x50] sm:$0xff]
    %v697 = vld [vmem:[%s685 + $0x58] sm:$0xff]
    %v698 = vld [vmem:[%s685 + $0x60] sm:$0xff]
    %v699 = vld [vmem:[%s685 + $0x68] sm:$0xff]
    %v700 = vld [vmem:[%s685 + $0x70] sm:$0xff]
    %v701 = vld [vmem:[%s685 + $0x78] sm:$0xff]
    %v702 = vld [vmem:[%s685 + $0x80] sm:$0xff]
    %v703 = vld [vmem:[%s685 + $0x88] sm:$0xff]
    %v704 = vld [vmem:[%s685 + $0x90] sm:$0xff]
    %v705 = vld [vmem:[%s685 + $0x98] sm:$0xff]
    %v706 = vld [vmem:[%s685 + $0xa0] sm:$0xff]
    %v707 = vld [vmem:[%s685 + $0xa8] sm:$0xff]
    %v708 = vld [vmem:[%s685 + $0xb0] sm:$0xff]
    %v709 = vld [vmem:[%s685 + $0xb8] sm:$0xff]
    %v710 = vld [vmem:[%s685 + $0xc0] sm:$0xff]
    %v711 = vld [vmem:[%s685 + $0xc8] sm:$0xff]
    %v712 = vld [vmem:[%s685 + $0xd0] sm:$0xff]
    %v713 = vld [vmem:[%s685 + $0xd8] sm:$0xff]
    %v714 = vld [vmem:[%s685 + $0xe0] sm:$0xff]
    %v715 = vld [vmem:[%s685 + $0xe8] sm:$0xff]
    %v716 = vld [vmem:[%s685 + $0xf0] sm:$0xff]
    %v717 = vld [vmem:[%s685 + $0xf8] sm:$0xff]
    %s718 = scalar_lea.vmem %s5, 2
    %v719 = vld [vmem:[%s718] sm:$0x3]
    %v721 = vlaneseq
    %v722 = vshrl.u32 %v721, 7
    %v723 = vsub.s32 0, %v722
    %v724 = vrot.slane %v719, %v723
    %v725 = vlaneseq
    %v726 = vshrl.u32 %v725, 7
    %v727 = vsub.s32 1, %v726
    %v728 = vrot.slane %v719, %v727
    %v763 = vunpack.c.l.b16 %v686
    %v764 = vunpack.c.h.b16 %v686
    %v765 = vunpack.c.l.b16 %v687
    %v766 = vunpack.c.h.b16 %v687
    %v767 = vunpack.c.l.b16 %v688
    %v768 = vunpack.c.h.b16 %v688
    %v769 = vunpack.c.l.b16 %v689
    %v770 = vunpack.c.h.b16 %v689
    %v771 = vunpack.c.l.b16 %v690
    %v772 = vunpack.c.h.b16 %v690
    %v773 = vunpack.c.l.b16 %v691
    %v774 = vunpack.c.h.b16 %v691
    %v775 = vunpack.c.l.b16 %v692
    %v776 = vunpack.c.h.b16 %v692
    %v777 = vunpack.c.l.b16 %v693
    %v778 = vunpack.c.h.b16 %v693
    %v779 = vunpack.c.l.b16 %v694
    %v780 = vunpack.c.h.b16 %v694
    %v781 = vunpack.c.l.b16 %v695
    %v782 = vunpack.c.h.b16 %v695
    %v783 = vunpack.c.l.b16 %v696
    %v784 = vunpack.c.h.b16 %v696
    %v785 = vunpack.c.l.b16 %v697
    %v786 = vunpack.c.h.b16 %v697
    %v787 = vunpack.c.l.b16 %v698
    %v788 = vunpack.c.h.b16 %v698
    %v789 = vunpack.c.l.b16 %v699
    %v790 = vunpack.c.h.b16 %v699
    %v791 = vunpack.c.l.b16 %v700
    %v792 = vunpack.c.h.b16 %v700
    %v793 = vunpack.c.l.b16 %v701
    %v794 = vunpack.c.h.b16 %v701
    %v795 = vunpack.c.l.b16 %v702
    %v796 = vunpack.c.h.b16 %v702
    %v797 = vunpack.c.l.b16 %v703
    %v798 = vunpack.c.h.b16 %v703
    %v799 = vunpack.c.l.b16 %v704
    %v800 = vunpack.c.h.b16 %v704
    %v801 = vunpack.c.l.b16 %v705
    %v802 = vunpack.c.h.b16 %v705
    %v803 = vunpack.c.l.b16 %v706
    %v804 = vunpack.c.h.b16 %v706
    %v805 = vunpack.c.l.b16 %v707
    %v806 = vunpack.c.h.b16 %v707
    %v807 = vunpack.c.l.b16 %v708
    %v808 = vunpack.c.h.b16 %v708
    %v809 = vunpack.c.l.b16 %v709
    %v810 = vunpack.c.h.b16 %v709
    %v811 = vunpack.c.l.b16 %v710
    %v812 = vunpack.c.h.b16 %v710
    %v813 = vunpack.c.l.b16 %v711
    %v814 = vunpack.c.h.b16 %v711
    %v815 = vunpack.c.l.b16 %v712
    %v816 = vunpack.c.h.b16 %v712
    %v817 = vunpack.c.l.b16 %v713
    %v818 = vunpack.c.h.b16 %v713
    %v819 = vunpack.c.l.b16 %v714
    %v820 = vunpack.c.h.b16 %v714
    %v821 = vunpack.c.l.b16 %v715
    %v822 = vunpack.c.h.b16 %v715
    %v823 = vunpack.c.l.b16 %v716
    %v824 = vunpack.c.h.b16 %v716
    %v825 = vunpack.c.l.b16 %v717
    %v826 = vunpack.c.h.b16 %v717
    %v827 = vpack.c.b16 %v765, %v763
    %v828 = vpack.c.b16 %v766, %v764
    %v829 = vpack.c.b16 %v769, %v767
    %v830 = vpack.c.b16 %v770, %v768
    %v831 = vpack.c.b16 %v773, %v771
    %v832 = vpack.c.b16 %v774, %v772
    %v833 = vpack.c.b16 %v777, %v775
    %v834 = vpack.c.b16 %v778, %v776
    %v835 = vpack.c.b16 %v781, %v779
    %v836 = vpack.c.b16 %v782, %v780
    %v837 = vpack.c.b16 %v785, %v783
    %v838 = vpack.c.b16 %v786, %v784
    %v839 = vpack.c.b16 %v789, %v787
    %v840 = vpack.c.b16 %v790, %v788
    %v841 = vpack.c.b16 %v793, %v791
    %v842 = vpack.c.b16 %v794, %v792
    %v843 = vpack.c.b16 %v797, %v795
    %v844 = vpack.c.b16 %v798, %v796
    %v845 = vpack.c.b16 %v801, %v799
    %v846 = vpack.c.b16 %v802, %v800
    %v847 = vpack.c.b16 %v805, %v803
    %v848 = vpack.c.b16 %v806, %v804
    %v849 = vpack.c.b16 %v809, %v807
    %v850 = vpack.c.b16 %v810, %v808
    %v851 = vpack.c.b16 %v813, %v811
    %v852 = vpack.c.b16 %v814, %v812
    %v853 = vpack.c.b16 %v817, %v815
    %v854 = vpack.c.b16 %v818, %v816
    %v855 = vpack.c.b16 %v821, %v819
    %v856 = vpack.c.b16 %v822, %v820
    %v857 = vpack.c.b16 %v825, %v823
    %v858 = vpack.c.b16 %v826, %v824
    %891 = vmatprep.subr.bf16.mxu0 %v842
    %892 = vmatpush1.bf16.msra.mxu0 %v841
    %893 = vmatprep.subr.bf16.mxu0 %v840
    %894 = vmatpush1.bf16.msra.mxu0 %v839
    %895 = vmatprep.subr.bf16.mxu0 %v838
    %896 = vmatpush1.bf16.msra.mxu0 %v837
    %897 = vmatprep.subr.bf16.mxu0 %v836
    %898 = vmatpush1.bf16.msra.mxu0 %v835
    %899 = vmatprep.subr.bf16.mxu0 %v834
    %900 = vmatpush1.bf16.msra.mxu0 %v833
    %901 = vmatprep.subr.bf16.mxu0 %v832
    %902 = vmatpush1.bf16.msra.mxu0 %v831
    %903 = vmatprep.subr.bf16.mxu0 %v830
    %904 = vmatpush1.bf16.msra.mxu0 %v829
    %905 = vmatprep.subr.bf16.mxu0 %v828
    %906 = vmatpush1.bf16.msra.mxu0 %v827
    %907 = vmatprep.subr.bf16.mxu0 %v858
    %908 = vmatpush2.bf16.msra.mxu0 %v857
    %909 = vmatprep.subr.bf16.mxu0 %v856
    %910 = vmatpush2.bf16.msra.mxu0 %v855
    %911 = vmatprep.subr.bf16.mxu0 %v854
    %912 = vmatpush2.bf16.msra.mxu0 %v853
    %913 = vmatprep.subr.bf16.mxu0 %v852
    %914 = vmatpush2.bf16.msra.mxu0 %v851
    %915 = vmatprep.subr.bf16.mxu0 %v850
    %916 = vmatpush2.bf16.msra.mxu0 %v849
    %917 = vmatprep.subr.bf16.mxu0 %v848
    %918 = vmatpush2.bf16.msra.mxu0 %v847
    %919 = vmatprep.subr.bf16.mxu0 %v846
    %920 = vmatpush2.bf16.msra.mxu0 %v845
    %921 = vmatprep.subr.bf16.mxu0 %v844
    %922 = vmatpush2.bf16.msra.mxu0 %v843
    %923 = vmatprep.mubr.bf16.mxu0 %v684
    %924 = vmatmul.mubr.bf16.gmra.mxu0 %v683
    %v925 = vpop.f32.mrf.mxu0
    %v926 = vadd.f32 %v724, %v925
    %v927 = vpop.f32.mrf.mxu0
    %v928 = vadd.f32 %v728, %v927
    %v929 = vpop.f32.mrf.mxu0
    %v930 = vadd.f32 %v724, %v929
    %v931 = vpop.f32.mrf.mxu0
    %v932 = vadd.f32 %v728, %v931
    %933 = vdwg.mxu0
    %v934 = vmax.f32 %v926, 0.0
    %v935 = vmax.f32 %v928, 0.0
    %v936 = vmax.f32 %v930, 0.0
    %v937 = vmax.f32 %v932, 0.0
    %s938 = scalar_lea.vmem %s6, 2
    %v939 = vld [vmem:[%s938] sm:$0x3]
    %v940 = vunpack.c.l.bf16 %v939
    %v942 = vlaneseq
    %v943 = vshrl.u32 %v942, 7
    %v944 = vsub.s32 0, %v943
    %v945 = vrot.slane %v940, %v944
    %v946 = vlaneseq
    %v947 = vshrl.u32 %v946, 7
    %v948 = vsub.s32 2, %v947
    %v949 = vrot.slane %v940, %v948
    %v952 = vlaneseq
    %v953 = vshrl.u32 %v952, 7
    %v954 = vsub.s32 0, %v953
    %v955 = vrot.slane %v945, %v954
    %v956 = vlaneseq
    %v957 = vshrl.u32 %v956, 7
    %v958 = vsub.s32 0, %v957
    %v959 = vrot.slane %v949, %v958
    %v960 = vmul.f32 %v934, %v955
    %v961 = vmul.f32 %v935, %v959
    %v962 = vmul.f32 %v936, %v955
    %v963 = vmul.f32 %v937, %v959
    %v964 = vadd.f32 %v960, %v961
    %965 = vadd.xlane.f32.xlu0 %v964
    %v966 = vpop.xlane.xlu0 %965
    %v967 = vadd.f32 %v962, %v963
    %968 = vadd.xlane.f32.xlu0 %v967
    %v969 = vpop.xlane.xlu0 %968
    %s970 = scalar_lea.vmem %s7, 1
    %v971 = vld [vmem:[%s970] sm:$0x1]
    %v973 = vlaneseq
    %v974 = vshrl.u32 %v973, 7
    %v975 = vsub.s32 0, %v974
    %v976 = vrot.slane %v971, %v975
    %v978 = vadd.f32 %v966, %v976
    %v979 = vadd.f32 %v969, %v976
    %982 = vrot.lane.b32.xlu0 %v978, 1
    %v983 = vpop.permute.xlu0 %982
    %984 = vrot.lane.b32.xlu0 %v979, 1
    %v985 = vpop.permute.xlu0 %984
    %vm988 = vcmask 7168
    %v989 = vsel %vm988, %v681, %v983
    %v990 = vsel %vm988, %v682, %v985
    %vm991 = vcmask 15360
    %992 = vst.msk [vmem:[%s8] sm:$0xff] %vm991, %v989
    %993 = vst.msk [vmem:[%s8 + $0x8] sm:$0xff] %vm991, %v990
    // Predicated region
    $region42: #{tpu_custom_call.1} parent=1 // pred_check
      _
    $region43: #{tpu_custom_call.1} parent=1 // pred_check_branch
      %995 = sbr.rel (0) target = $region45
    $region44: #{tpu_custom_call.1} parent=1 // pred_region
      _
    $region45: #{tpu_custom_call.1} parent=1 // pred_fallthru
      _
    // Predicated region
    $region46: #{tpu_custom_call.1} parent=1 // pred_check
      _
    $region47: #{tpu_custom_call.1} parent=1 // pred_check_branch
      %997 = sbr.rel (0) target = $region49
    $region48: #{tpu_custom_call.1} parent=1 // pred_region
      _
    $region49: #{tpu_custom_call.1} parent=1 // pred_fallthru
      _
    %998 = vsyncpa [#allocation3], 1
    %999 = vsyncpa [#allocation5], 1

</llo_original>
